<compile_context>
chip_gen: v5e
topology: v5e:2x2
jax: 0.10.0
libtpu: 0.0.40
codegen_flags: <defaults>
</compile_context>

<pallas_src>
import functools

import numpy as np
import jax
import jax.numpy as jnp
from jax import lax
from jax.experimental import pallas as pl
from jax.experimental.pallas import tpu as pltpu


# ----------------------------------------------------------------------------
# Single fused kernel: hoisted prologue matmuls + autoregressive LSTM decoder.
# All per-timestep tensors are time-major and flattened to 2D with the batch
# padded to a sublane multiple, so every in-loop slice is tile aligned.
# ----------------------------------------------------------------------------
def seq2seq_kernel(
    mask_ref,            # SMEM (T,) int32 teacher-forcing mask (scalar prefetch)
    src_ref,             # (T*Bp, D_src)  time-major source features (f32)
    tgt_ref,             # (T*Bp, D_in)   time-major ground-truth inputs (f32)
    h0_ref, c0_ref,      # (Bp, H)        initial LSTM state (f32)
    prev0_ref,           # (Bp, D_in)     initial previous decoder output (f32)
    w_comb_ref,          # (D_src, D_in)  folded  W_enc @ W_le   (compute dtype)
    b_comb_ref,          # (1, D_in)      folded  b_enc @ W_le + b_lin  (f32)
    w_ih_ref,            # (D_in, 4H)     LSTM input -> gates    (compute dtype)
    w_hh_ref,            # (H, 4H)        LSTM hidden -> gates   (compute dtype)
    b_lstm_ref,          # (1, 4H)        b_ih + b_hh            (f32)
    w_lh_ref,            # (H, D_in)      h-half of final linear (compute dtype)
    out_ref,             # (T*Bp, D_in)   output sequence (f32)
    enc_scr,             # VMEM (T*Bp, D_in)  scratch: encoder contribution
    gx_scr,              # VMEM (T*Bp, 4H)    scratch: tgt @ W_ih
):
    T = mask_ref.shape[0]
    Bp, H = h0_ref.shape
    cdt = w_ih_ref.dtype            # MXU operand dtype (f32 or bf16)

    # ---- Prologue: two big MXU matmuls, hoisted out of the recurrence ------
    # Encoder contribution for ALL timesteps (folded W_enc @ W_le chain).
    enc_scr[...] = (
        jnp.dot(src_ref[...].astype(cdt), w_comb_ref[...],
                preferred_element_type=jnp.float32)
        + b_comb_ref[...]
    )
    # Input projection of the ground-truth decoder inputs for ALL timesteps
    # (removes the per-step concat([x, h]) and, on teacher-forced steps, the
    # x-matmul from the serial critical path).
    gx_scr[...] = jnp.dot(tgt_ref[...].astype(cdt), w_ih_ref[...],
                          preferred_element_type=jnp.float32)

    # Weights loaded once; bias broadcast hoisted (no per-step broadcast_in_dim).
    w_ih = w_ih_ref[...]
    w_hh = w_hh_ref[...]
    w_lh = w_lh_ref[...]
    b_g = jnp.broadcast_to(b_lstm_ref[...], (Bp, 4 * H))

    def step(t, carry):
        h, c, prev = carry
        row = pl.multiple_of(t * Bp, Bp)        # sublane-aligned row offset

        # Teacher forcing: precomputed gx on ground-truth steps, otherwise
        # project the previous prediction.
        use_gt = mask_ref[t] == 1
        x_proj = jnp.where(
            use_gt,
            gx_scr[pl.ds(row, Bp), :],
            jnp.dot(prev.astype(cdt), w_ih, preferred_element_type=jnp.float32),
        )

        # LSTM cell, PyTorch gate order (i, f, g, o).  Gates/state kept f32.
        gates = x_proj + jnp.dot(h.astype(cdt), w_hh,
                                 preferred_element_type=jnp.float32) + b_g
        # NOTE: with H=32 all four gates sit inside one 128-lane vreg; keep
        # 4H a multiple of 128 (and ideally H % 128 == 0 at real sizes).
        i_g = jax.nn.sigmoid(gates[:, 0 * H:1 * H])
        f_g = jax.nn.sigmoid(gates[:, 1 * H:2 * H])
        g_g = jnp.tanh(gates[:, 2 * H:3 * H])
        o_g = jax.nn.sigmoid(gates[:, 3 * H:4 * H])
        c_new = f_g * c + i_g * g_g
        h_new = o_g * jnp.tanh(c_new)

        # linear(concat([h, enc[t]])) == h @ W_lh + enc_contrib[t]
        # enc_contrib lives in its own scratch -> out_ref store is WRITE-ONLY.
        dec_out = (
            jnp.dot(h_new.astype(cdt), w_lh, preferred_element_type=jnp.float32)
            + enc_scr[pl.ds(row, Bp), :]
        )
        out_ref[pl.ds(row, Bp), :] = dec_out
        return h_new, c_new, dec_out

    # Full unroll only for tiny T; partial unroll keeps LLO visibility without
    # blowing the 64-vreg budget / compile time for long sequences.
    unroll = True if T <= 32 else 4
    lax.fori_loop(0, T, step,
                  (h0_ref[...], c0_ref[...], prev0_ref[...]),
                  unroll=unroll)


def seq2seq_decode(mask, src_2d, tgt_2d, h0, c0, prev0,
                   w_comb, b_comb, w_ih, w_hh, b_lstm, w_lh):
    TB, D_src = src_2d.shape
    _, D_in = tgt_2d.shape
    Bp, H = h0.shape

    def full(shape):
        return pl.BlockSpec(shape, lambda i, m: (0,) * len(shape))

    grid_spec = pltpu.PrefetchScalarGridSpec(
        num_scalar_prefetch=1,          # the (T,) int32 mask -> SMEM
        grid=(1,),                      # single program; recurrence lives inside
        in_specs=[
            full((TB, D_src)),          # src (time-major, batch-padded)
            full((TB, D_in)),           # tgt
            full((Bp, H)),              # h0
            full((Bp, H)),              # c0
            full((Bp, D_in)),           # prev0 (initial dec_output)
            full(w_comb.shape),         # folded W_enc @ W_le
            full(b_comb.shape),         # folded bias
            full(w_ih.shape),           # W_ih
            full(w_hh.shape),           # W_hh
            full(b_lstm.shape),         # b_ih + b_hh
            full(w_lh.shape),           # W_lh (h-half of final linear)
        ],
        out_specs=full((TB, D_in)),
        scratch_shapes=[
            pltpu.VMEM((TB, D_in), jnp.float32),    # encoder contribution
            pltpu.VMEM((TB, 4 * H), jnp.float32),   # tgt @ W_ih
        ],
    )

    return pl.pallas_call(
        seq2seq_kernel,
        grid_spec=grid_spec,
        out_shape=jax.ShapeDtypeStruct((TB, D_in), jnp.float32),
        compiler_params=pltpu.CompilerParams(
            dimension_semantics=("arbitrary",)),
    )(mask, src_2d, tgt_2d, h0, c0, prev0,
      w_comb, b_comb, w_ih, w_hh, b_lstm, w_lh)


# ----------------------------------------------------------------------------
# Host-side teacher-forcing mask, bit-exact with the PyTorch construction
# (int(epoch_i * lambda_v) in double precision).  The mask is an ordinary
# (T,) array argument, so changing epoch_i never retraces the jitted forward.
# ----------------------------------------------------------------------------
def build_mask(seq_len, epoch_i, condition_step=10, lambda_v=0.01):
    pred_len = int(epoch_i * lambda_v)
    gt = np.ones((seq_len, condition_step), np.int32)
    pr = np.zeros((seq_len, pred_len), np.int32)
    m = np.concatenate([pr, gt], axis=1).reshape(-1)[:seq_len]
    return jnp.asarray(m, jnp.int32)


# ----------------------------------------------------------------------------
# Full forward (layout glue in plain JAX, all hot work in the Pallas kernel).
# ----------------------------------------------------------------------------
def model_forward(params, src_seq, src_pos, tgt_seq, hidden, dec_output, mask,
                  mxu_dtype=jnp.float32):
    del src_pos  # see TODO(synk) at top of file
    B, T, D_in = tgt_seq.shape
    h0, c0 = hidden

    # Fold the encoder chain (tiny matmuls, done once per call).
    w_comb = (params["w_enc"] @ params["w_le"]).astype(mxu_dtype)
    b_comb = (params["b_enc"] @ params["w_le"] + params["b_lin"]).astype(jnp.float32)

    # Pad batch to a full f32 sublane (8) so in-loop row slices are aligned.
    Bp = ((B + 7) // 8) * 8
    pad = Bp - B

    def pad_b(x):
        if pad == 0:
            return x
        return jnp.pad(x, ((0, pad),) + ((0, 0),) * (x.ndim - 1))

    src_p = pad_b(src_seq.astype(jnp.float32))
    tgt_p = pad_b(tgt_seq.astype(jnp.float32))
    h0_p = pad_b(h0.astype(jnp.float32))
    c0_p = pad_b(c0.astype(jnp.float32))
    prev0_p = pad_b(dec_output.astype(jnp.float32))

    # Time-major, flattened 2D views (row index = t*Bp + b).
    D_src = src_seq.shape[-1]
    src_2d = jnp.transpose(src_p, (1, 0, 2)).reshape(T * Bp, D_src)
    tgt_2d = jnp.transpose(tgt_p, (1, 0, 2)).reshape(T * Bp, D_in)

    out_2d = seq2seq_decode(
        mask, src_2d, tgt_2d, h0_p, c0_p, prev0_p,
        w_comb, b_comb,
        params["w_ih"].astype(mxu_dtype),
        params["w_hh"].astype(mxu_dtype),
        params["b_lstm"].astype(jnp.float32),
        params["w_lh"].astype(mxu_dtype),
    )
    out_seq = jnp.transpose(out_2d.reshape(T, Bp, D_in), (1, 0, 2))[:B]
    # TODO(synk): SMPL-based post_process skipped (external body-model asset).
    return out_seq


# ----------------------------------------------------------------------------
# Pure-JAX reference (mirrors the PyTorch loop) for a correctness check.
# ----------------------------------------------------------------------------
def reference_forward(params, src_seq, tgt_seq, h0, c0, prev0, epoch_i,
                      condition_step=10, lambda_v=0.01):
    B, T, D_in = tgt_seq.shape
    H = h0.shape[1]
    pred_len = int(epoch_i * lambda_v)
    gt_mask = np.ones((T, condition_step))
    pr_mask = np.zeros((T, pred_len))
    mask = np.concatenate([pr_mask, gt_mask], axis=1).reshape(-1)[:T]

    enc = src_seq @ params["w_enc"] + params["b_enc"]          # (B, T, M)
    h, c, prev = h0, c0, prev0
    outs = []
    for i in range(T):
        dec_in = tgt_seq[:, i] if mask[i] == 1 else prev
        gates = dec_in @ params["w_ih"] + h @ params["w_hh"] + params["b_lstm"]
        i_g = jax.nn.sigmoid(gates[:, 0 * H:1 * H])
        f_g = jax.nn.sigmoid(gates[:, 1 * H:2 * H])
        g_g = jnp.tanh(gates[:, 2 * H:3 * H])
        o_g = jax.nn.sigmoid(gates[:, 3 * H:4 * H])
        c = f_g * c + i_g * g_g
        h = o_g * jnp.tanh(c)
        dec_out = h @ params["w_lh"] + enc[:, i] @ params["w_le"] + params["b_lin"]
        outs.append(dec_out)
        prev = dec_out
    return jnp.stack(outs, axis=1)                              # (B, T, D_in)


# ----------------------------------------------------------------------------
# Deterministic parameter init + smoke test.
# ----------------------------------------------------------------------------
def init_params(key, d_src, d_model, d_in, hidden):
    ks = jax.random.split(key, 8)
    s = 0.1
    return {
        "w_enc": s * jax.random.normal(ks[0], (d_src, d_model), jnp.float32),
        "b_enc": s * jax.random.normal(ks[1], (1, d_model), jnp.float32),
        "w_ih": s * jax.random.normal(ks[2], (d_in, 4 * hidden), jnp.float32),
        "w_hh": s * jax.random.normal(ks[3], (hidden, 4 * hidden), jnp.float32),
        "b_lstm": s * jax.random.normal(ks[4], (1, 4 * hidden), jnp.float32),
        "w_lh": s * jax.random.normal(ks[5], (hidden, d_in), jnp.float32),
        "w_le": s * jax.random.normal(ks[6], (d_model, d_in), jnp.float32),
        "b_lin": s * jax.random.normal(ks[7], (1, d_in), jnp.float32),
    }


if __name__ == "__main__":
    B, T = 2, 8            # batch, sequence length
    D_SRC = 16             # encoder input feature dim
    D_MODEL = 32           # encoder.d_model
    HIDDEN = 32            # decoder.hidden_size (4H = 128 lanes)
    D_IN = 16              # decoder.input_size (== tgt feature dim)
    EPOCH_I = 300          # int(epoch_i * lambda_v) = 3 -> mixed mask
    COND, LAMBDA = 10, 0.01

    key = jax.random.PRNGKey(0)
    kp, k1, k2, k3, k4, k5 = jax.random.split(key, 6)
    params = init_params(kp, D_SRC, D_MODEL, D_IN, HIDDEN)

    src_seq = jax.random.normal(k1, (B, T, D_SRC), jnp.float32)
    src_pos = jnp.tile(jnp.arange(T, dtype=jnp.int32)[None, :], (B, 1))
    tgt_seq = jax.random.normal(k2, (B, T, D_IN), jnp.float32)
    h0 = jax.random.normal(k3, (B, HIDDEN), jnp.float32)
    c0 = jax.random.normal(k4, (B, HIDDEN), jnp.float32)
    dec_output0 = jax.random.normal(k5, (B, D_IN), jnp.float32)

    mask = build_mask(T, EPOCH_I, COND, LAMBDA)
    ref = reference_forward(params, src_seq, tgt_seq, h0, c0, dec_output0,
                            EPOCH_I, condition_step=COND, lambda_v=LAMBDA)

    # --- f32 MXU path (bit-comparable to the reference) ---------------------
    fwd = jax.jit(functools.partial(model_forward, mxu_dtype=jnp.float32))
    out = fwd(params, src_seq, src_pos, tgt_seq, (h0, c0), dec_output0, mask)
    out = jax.block_until_ready(out)
    assert out.shape == (B, T, D_IN), out.shape
    assert bool(jnp.all(jnp.isfinite(out)))
    assert bool(jnp.allclose(out, ref, atol=1e-4, rtol=1e-4)), (
        float(jnp.max(jnp.abs(out - ref))))

    # --- bf16 MXU-operand path (v6e/v7x optimization; f32 state & accum) -----
    fwd_bf16 = jax.jit(functools.partial(model_forward, mxu_dtype=jnp.bfloat16))
    out_bf16 = fwd_bf16(params, src_seq, src_pos, tgt_seq, (h0, c0),
                        dec_output0, mask)
    out_bf16 = jax.block_until_ready(out_bf16)
    assert out_bf16.shape == (B, T, D_IN), out_bf16.shape
    assert bool(jnp.all(jnp.isfinite(out_bf16)))
    assert bool(jnp.allclose(out_bf16, ref, atol=1e-1, rtol=1e-1)), (
        float(jnp.max(jnp.abs(out_bf16 - ref))))

    print("KERNEL_OK")
</pallas_src>

<mosaic_0001>
module attributes {stable_mosaic.version = 11 : i64} {
  func.func @seq2seq_kernel(%arg0: i32, %arg1: memref<8xi32, #tpu.memory_space<smem>>, %arg2: memref<64x16xf32, #tpu.memory_space<vmem>>, %arg3: memref<64x16xf32, #tpu.memory_space<vmem>>, %arg4: memref<8x32xf32, #tpu.memory_space<vmem>>, %arg5: memref<8x32xf32, #tpu.memory_space<vmem>>, %arg6: memref<8x16xf32, #tpu.memory_space<vmem>>, %arg7: memref<16x16xf32, #tpu.memory_space<vmem>>, %arg8: memref<1x16xf32, #tpu.memory_space<vmem>>, %arg9: memref<16x128xf32, #tpu.memory_space<vmem>>, %arg10: memref<32x128xf32, #tpu.memory_space<vmem>>, %arg11: memref<1x128xf32, #tpu.memory_space<vmem>>, %arg12: memref<32x16xf32, #tpu.memory_space<vmem>>, %arg13: memref<64x16xf32, #tpu.memory_space<vmem>>, %arg14: memref<64x16xf32, #tpu.memory_space<vmem>>, %arg15: memref<64x128xf32, #tpu.memory_space<vmem>>) attributes {dimension_semantics = [#tpu.dimension_semantics<arbitrary>], iteration_bounds = array<i64: 1>, scalar_prefetch = 1 : i64, scratch_operands = 2 : i64, tpu.core_type = #tpu.core_type<tc>, window_params = [{pipeline_mode = #tpu.pipeline_mode<synchronous>, transform_indices = @transform_0, window_bounds = array<i64: 64, 16>}, {pipeline_mode = #tpu.pipeline_mode<synchronous>, transform_indices = @transform_1, window_bounds = array<i64: 64, 16>}, {pipeline_mode = #tpu.pipeline_mode<synchronous>, transform_indices = @transform_2, window_bounds = array<i64: 8, 32>}, {pipeline_mode = #tpu.pipeline_mode<synchronous>, transform_indices = @transform_3, window_bounds = array<i64: 8, 32>}, {pipeline_mode = #tpu.pipeline_mode<synchronous>, transform_indices = @transform_4, window_bounds = array<i64: 8, 16>}, {pipeline_mode = #tpu.pipeline_mode<synchronous>, transform_indices = @transform_5, window_bounds = array<i64: 16, 16>}, {pipeline_mode = #tpu.pipeline_mode<synchronous>, transform_indices = @transform_6, window_bounds = array<i64: 1, 16>}, {pipeline_mode = #tpu.pipeline_mode<synchronous>, transform_indices = @transform_7, window_bounds = array<i64: 16, 128>}, {pipeline_mode = #tpu.pipeline_mode<synchronous>, transform_indices = @transform_8, window_bounds = array<i64: 32, 128>}, {pipeline_mode = #tpu.pipeline_mode<synchronous>, transform_indices = @transform_9, window_bounds = array<i64: 1, 128>}, {pipeline_mode = #tpu.pipeline_mode<synchronous>, transform_indices = @transform_10, window_bounds = array<i64: 32, 16>}, {pipeline_mode = #tpu.pipeline_mode<synchronous>, transform_indices = @transform_11, window_bounds = array<i64: 64, 16>}]} {
    %c0 = arith.constant 0 : index
    %c0_0 = arith.constant 0 : index
    %0 = vector.load %arg2[%c0, %c0_0] : memref<64x16xf32, #tpu.memory_space<vmem>>, vector<64x16xf32>
    %c0_1 = arith.constant 0 : index
    %c0_2 = arith.constant 0 : index
    %1 = vector.load %arg7[%c0_1, %c0_2] : memref<16x16xf32, #tpu.memory_space<vmem>>, vector<16x16xf32>
    %cst = arith.constant dense<0.000000e+00> : vector<64x16xf32>
    %2 = tpu.matmul %0, %1, %cst {dimension_numbers = #tpu.dot_dimension_numbers<[1], [0], [0], [1], [0, 0, 1, 1], [], []>} : vector<64x16xf32>, vector<16x16xf32>, vector<64x16xf32> -> vector<64x16xf32>
    %c0_3 = arith.constant 0 : index
    %c0_4 = arith.constant 0 : index
    %3 = vector.load %arg8[%c0_3, %c0_4] : memref<1x16xf32, #tpu.memory_space<vmem>>, vector<1x16xf32>
    %4 = vector.broadcast %3 : vector<1x16xf32> to vector<64x16xf32>
    %5 = arith.addf %2, %4 : vector<64x16xf32>
    %c0_5 = arith.constant 0 : index
    %c0_6 = arith.constant 0 : index
    %6 = vector.load %arg14[%c0_5, %c0_6] : memref<64x16xf32, #tpu.memory_space<vmem>>, vector<64x16xf32>
    tpu.vector_store %arg14[%c0_5, %c0_6], %5 {strides = array<i32>} : memref<64x16xf32, #tpu.memory_space<vmem>>, vector<64x16xf32>,
    %c0_7 = arith.constant 0 : index
    %c0_8 = arith.constant 0 : index
    %7 = vector.load %arg3[%c0_7, %c0_8] : memref<64x16xf32, #tpu.memory_space<vmem>>, vector<64x16xf32>
    %c0_9 = arith.constant 0 : index
    %c0_10 = arith.constant 0 : index
    %8 = vector.load %arg9[%c0_9, %c0_10] : memref<16x128xf32, #tpu.memory_space<vmem>>, vector<16x128xf32>
    %cst_11 = arith.constant dense<0.000000e+00> : vector<64x128xf32>
    %9 = tpu.matmul %7, %8, %cst_11 {dimension_numbers = #tpu.dot_dimension_numbers<[1], [0], [0], [1], [0, 0, 1, 1], [], []>} : vector<64x16xf32>, vector<16x128xf32>, vector<64x128xf32> -> vector<64x128xf32>
    %c0_12 = arith.constant 0 : index
    %c0_13 = arith.constant 0 : index
    %10 = vector.load %arg15[%c0_12, %c0_13] : memref<64x128xf32, #tpu.memory_space<vmem>>, vector<64x128xf32>
    tpu.vector_store %arg15[%c0_12, %c0_13], %9 {strides = array<i32>} : memref<64x128xf32, #tpu.memory_space<vmem>>, vector<64x128xf32>,
    %c0_14 = arith.constant 0 : index
    %c0_15 = arith.constant 0 : index
    %11 = vector.load %arg9[%c0_14, %c0_15] : memref<16x128xf32, #tpu.memory_space<vmem>>, vector<16x128xf32>
    %c0_16 = arith.constant 0 : index
    %c0_17 = arith.constant 0 : index
    %12 = vector.load %arg10[%c0_16, %c0_17] : memref<32x128xf32, #tpu.memory_space<vmem>>, vector<32x128xf32>
    %c0_18 = arith.constant 0 : index
    %c0_19 = arith.constant 0 : index
    %13 = vector.load %arg12[%c0_18, %c0_19] : memref<32x16xf32, #tpu.memory_space<vmem>>, vector<32x16xf32>
    %c0_20 = arith.constant 0 : index
    %c0_21 = arith.constant 0 : index
    %14 = vector.load %arg11[%c0_20, %c0_21] : memref<1x128xf32, #tpu.memory_space<vmem>>, vector<1x128xf32>
    %15 = vector.shape_cast %14 : vector<1x128xf32> to vector<1x128xf32>
    %16 = vector.broadcast %15 : vector<1x128xf32> to vector<8x128xf32>
    %c0_22 = arith.constant 0 : index
    %c0_23 = arith.constant 0 : index
    %17 = vector.load %arg4[%c0_22, %c0_23] : memref<8x32xf32, #tpu.memory_space<vmem>>, vector<8x32xf32>
    %c0_24 = arith.constant 0 : index
    %c0_25 = arith.constant 0 : index
    %18 = vector.load %arg5[%c0_24, %c0_25] : memref<8x32xf32, #tpu.memory_space<vmem>>, vector<8x32xf32>
    %c0_26 = arith.constant 0 : index
    %c0_27 = arith.constant 0 : index
    %19 = vector.load %arg6[%c0_26, %c0_27] : memref<8x16xf32, #tpu.memory_space<vmem>>, vector<8x16xf32>
    %c0_i32 = arith.constant 0 : i32
    %c8_i32 = arith.constant 8 : i32
    %20 = arith.muli %c0_i32, %c8_i32 : i32
    %21 = tpu.assume_multiple %20, 8 : i32
    %22 = arith.index_cast %c0_i32 : i32 to index
    %23 = memref.load %arg1[%22] : memref<8xi32, #tpu.memory_space<smem>>
    %c1_i32 = arith.constant 1 : i32
    %24 = arith.cmpi eq, %23, %c1_i32 : i32
    %25 = arith.index_cast %21 : i32 to index
    %c0_28 = arith.constant 0 : index
    %26 = vector.load %arg15[%25, %c0_28] : memref<64x128xf32, #tpu.memory_space<vmem>>, vector<8x128xf32>
    %cst_29 = arith.constant dense<0.000000e+00> : vector<8x128xf32>
    %27 = tpu.matmul %19, %11, %cst_29 {dimension_numbers = #tpu.dot_dimension_numbers<[1], [0], [0], [1], [0, 0, 1, 1], [], []>} : vector<8x16xf32>, vector<16x128xf32>, vector<8x128xf32> -> vector<8x128xf32>
    %28 = arith.select %24, %26, %27 : vector<8x128xf32>
    %cst_30 = arith.constant dense<0.000000e+00> : vector<8x128xf32>
    %29 = tpu.matmul %17, %12, %cst_30 {dimension_numbers = #tpu.dot_dimension_numbers<[1], [0], [0], [1], [0, 0, 1, 1], [], []>} : vector<8x32xf32>, vector<32x128xf32>, vector<8x128xf32> -> vector<8x128xf32>
    %30 = arith.addf %28, %29 : vector<8x128xf32>
    %31 = arith.addf %30, %16 : vector<8x128xf32>
    %32 = vector.extract_strided_slice %31 {offsets = [0, 0], sizes = [8, 32], strides = [1, 1]} : vector<8x128xf32> to vector<8x32xf32>
    %33 = arith.negf %32 : vector<8x32xf32>
    %34 = math.exp %33 : vector<8x32xf32>
    %cst_31 = arith.constant 1.000000e+00 : f32
    %35 = vector.broadcast %cst_31 : f32 to vector<8x32xf32>
    %36 = arith.addf %35, %34 : vector<8x32xf32>
    %37 = arith.divf %35, %36 : vector<8x32xf32>
    %38 = vector.extract_strided_slice %31 {offsets = [0, 32], sizes = [8, 32], strides = [1, 1]} : vector<8x128xf32> to vector<8x32xf32>
    %39 = arith.negf %38 : vector<8x32xf32>
    %40 = math.exp %39 : vector<8x32xf32>
    %cst_32 = arith.constant 1.000000e+00 : f32
    %41 = vector.broadcast %cst_32 : f32 to vector<8x32xf32>
    %42 = arith.addf %41, %40 : vector<8x32xf32>
    %43 = arith.divf %41, %42 : vector<8x32xf32>
    %44 = vector.extract_strided_slice %31 {offsets = [0, 64], sizes = [8, 32], strides = [1, 1]} : vector<8x128xf32> to vector<8x32xf32>
    %45 = math.tanh %44 : vector<8x32xf32>
    %46 = vector.extract_strided_slice %31 {offsets = [0, 96], sizes = [8, 32], strides = [1, 1]} : vector<8x128xf32> to vector<8x32xf32>
    %47 = arith.negf %46 : vector<8x32xf32>
    %48 = math.exp %47 : vector<8x32xf32>
    %cst_33 = arith.constant 1.000000e+00 : f32
    %49 = vector.broadcast %cst_33 : f32 to vector<8x32xf32>
    %50 = arith.addf %49, %48 : vector<8x32xf32>
    %51 = arith.divf %49, %50 : vector<8x32xf32>
    %52 = arith.mulf %43, %18 : vector<8x32xf32>
    %53 = arith.mulf %37, %45 : vector<8x32xf32>
    %54 = arith.addf %52, %53 : vector<8x32xf32>
    %55 = math.tanh %54 : vector<8x32xf32>
    %56 = arith.mulf %51, %55 : vector<8x32xf32>
    %cst_34 = arith.constant dense<0.000000e+00> : vector<8x16xf32>
    %57 = tpu.matmul %56, %13, %cst_34 {dimension_numbers = #tpu.dot_dimension_numbers<[1], [0], [0], [1], [0, 0, 1, 1], [], []>} : vector<8x32xf32>, vector<32x16xf32>, vector<8x16xf32> -> vector<8x16xf32>
    %58 = arith.index_cast %21 : i32 to index
    %c0_35 = arith.constant 0 : index
    %59 = vector.load %arg14[%58, %c0_35] : memref<64x16xf32, #tpu.memory_space<vmem>>, vector<8x16xf32>
    %60 = arith.addf %57, %59 : vector<8x16xf32>
    %61 = arith.index_cast %21 : i32 to index
    %c0_36 = arith.constant 0 : index
    %62 = vector.load %arg13[%61, %c0_36] : memref<64x16xf32, #tpu.memory_space<vmem>>, vector<8x16xf32>
    tpu.vector_store %arg13[%61, %c0_36], %60 {strides = array<i32>} : memref<64x16xf32, #tpu.memory_space<vmem>>, vector<8x16xf32>,
    %c1_i32_37 = arith.constant 1 : i32
    %c8_i32_38 = arith.constant 8 : i32
    %63 = arith.muli %c1_i32_37, %c8_i32_38 : i32
    %64 = tpu.assume_multiple %63, 8 : i32
    %65 = arith.index_cast %c1_i32_37 : i32 to index
    %66 = memref.load %arg1[%65] : memref<8xi32, #tpu.memory_space<smem>>
    %c1_i32_39 = arith.constant 1 : i32
    %67 = arith.cmpi eq, %66, %c1_i32_39 : i32
    %68 = arith.index_cast %64 : i32 to index
    %c0_40 = arith.constant 0 : index
    %69 = vector.load %arg15[%68, %c0_40] : memref<64x128xf32, #tpu.memory_space<vmem>>, vector<8x128xf32>
    %cst_41 = arith.constant dense<0.000000e+00> : vector<8x128xf32>
    %70 = tpu.matmul %60, %11, %cst_41 {dimension_numbers = #tpu.dot_dimension_numbers<[1], [0], [0], [1], [0, 0, 1, 1], [], []>} : vector<8x16xf32>, vector<16x128xf32>, vector<8x128xf32> -> vector<8x128xf32>
    %71 = arith.select %67, %69, %70 : vector<8x128xf32>
    %cst_42 = arith.constant dense<0.000000e+00> : vector<8x128xf32>
    %72 = tpu.matmul %56, %12, %cst_42 {dimension_numbers = #tpu.dot_dimension_numbers<[1], [0], [0], [1], [0, 0, 1, 1], [], []>} : vector<8x32xf32>, vector<32x128xf32>, vector<8x128xf32> -> vector<8x128xf32>
    %73 = arith.addf %71, %72 : vector<8x128xf32>
    %74 = arith.addf %73, %16 : vector<8x128xf32>
    %75 = vector.extract_strided_slice %74 {offsets = [0, 0], sizes = [8, 32], strides = [1, 1]} : vector<8x128xf32> to vector<8x32xf32>
    %76 = arith.negf %75 : vector<8x32xf32>
    %77 = math.exp %76 : vector<8x32xf32>
    %cst_43 = arith.constant 1.000000e+00 : f32
    %78 = vector.broadcast %cst_43 : f32 to vector<8x32xf32>
    %79 = arith.addf %78, %77 : vector<8x32xf32>
    %80 = arith.divf %78, %79 : vector<8x32xf32>
    %81 = vector.extract_strided_slice %74 {offsets = [0, 32], sizes = [8, 32], strides = [1, 1]} : vector<8x128xf32> to vector<8x32xf32>
    %82 = arith.negf %81 : vector<8x32xf32>
    %83 = math.exp %82 : vector<8x32xf32>
    %cst_44 = arith.constant 1.000000e+00 : f32
    %84 = vector.broadcast %cst_44 : f32 to vector<8x32xf32>
    %85 = arith.addf %84, %83 : vector<8x32xf32>
    %86 = arith.divf %84, %85 : vector<8x32xf32>
    %87 = vector.extract_strided_slice %74 {offsets = [0, 64], sizes = [8, 32], strides = [1, 1]} : vector<8x128xf32> to vector<8x32xf32>
    %88 = math.tanh %87 : vector<8x32xf32>
    %89 = vector.extract_strided_slice %74 {offsets = [0, 96], sizes = [8, 32], strides = [1, 1]} : vector<8x128xf32> to vector<8x32xf32>
    %90 = arith.negf %89 : vector<8x32xf32>
    %91 = math.exp %90 : vector<8x32xf32>
    %cst_45 = arith.constant 1.000000e+00 : f32
    %92 = vector.broadcast %cst_45 : f32 to vector<8x32xf32>
    %93 = arith.addf %92, %91 : vector<8x32xf32>
    %94 = arith.divf %92, %93 : vector<8x32xf32>
    %95 = arith.mulf %86, %54 : vector<8x32xf32>
    %96 = arith.mulf %80, %88 : vector<8x32xf32>
    %97 = arith.addf %95, %96 : vector<8x32xf32>
    %98 = math.tanh %97 : vector<8x32xf32>
    %99 = arith.mulf %94, %98 : vector<8x32xf32>
    %cst_46 = arith.constant dense<0.000000e+00> : vector<8x16xf32>
    %100 = tpu.matmul %99, %13, %cst_46 {dimension_numbers = #tpu.dot_dimension_numbers<[1], [0], [0], [1], [0, 0, 1, 1], [], []>} : vector<8x32xf32>, vector<32x16xf32>, vector<8x16xf32> -> vector<8x16xf32>
    %101 = arith.index_cast %64 : i32 to index
    %c0_47 = arith.constant 0 : index
    %102 = vector.load %arg14[%101, %c0_47] : memref<64x16xf32, #tpu.memory_space<vmem>>, vector<8x16xf32>
    %103 = arith.addf %100, %102 : vector<8x16xf32>
    %104 = arith.index_cast %64 : i32 to index
    %c0_48 = arith.constant 0 : index
    %105 = vector.load %arg13[%104, %c0_48] : memref<64x16xf32, #tpu.memory_space<vmem>>, vector<8x16xf32>
    tpu.vector_store %arg13[%104, %c0_48], %103 {strides = array<i32>} : memref<64x16xf32, #tpu.memory_space<vmem>>, vector<8x16xf32>,
    %c2_i32 = arith.constant 2 : i32
    %c8_i32_49 = arith.constant 8 : i32
    %106 = arith.muli %c2_i32, %c8_i32_49 : i32
    %107 = tpu.assume_multiple %106, 8 : i32
    %108 = arith.index_cast %c2_i32 : i32 to index
    %109 = memref.load %arg1[%108] : memref<8xi32, #tpu.memory_space<smem>>
    %c1_i32_50 = arith.constant 1 : i32
    %110 = arith.cmpi eq, %109, %c1_i32_50 : i32
    %111 = arith.index_cast %107 : i32 to index
    %c0_51 = arith.constant 0 : index
    %112 = vector.load %arg15[%111, %c0_51] : memref<64x128xf32, #tpu.memory_space<vmem>>, vector<8x128xf32>
    %cst_52 = arith.constant dense<0.000000e+00> : vector<8x128xf32>
    %113 = tpu.matmul %103, %11, %cst_52 {dimension_numbers = #tpu.dot_dimension_numbers<[1], [0], [0], [1], [0, 0, 1, 1], [], []>} : vector<8x16xf32>, vector<16x128xf32>, vector<8x128xf32> -> vector<8x128xf32>
    %114 = arith.select %110, %112, %113 : vector<8x128xf32>
    %cst_53 = arith.constant dense<0.000000e+00> : vector<8x128xf32>
    %115 = tpu.matmul %99, %12, %cst_53 {dimension_numbers = #tpu.dot_dimension_numbers<[1], [0], [0], [1], [0, 0, 1, 1], [], []>} : vector<8x32xf32>, vector<32x128xf32>, vector<8x128xf32> -> vector<8x128xf32>
    %116 = arith.addf %114, %115 : vector<8x128xf32>
    %117 = arith.addf %116, %16 : vector<8x128xf32>
    %118 = vector.extract_strided_slice %117 {offsets = [0, 0], sizes = [8, 32], strides = [1, 1]} : vector<8x128xf32> to vector<8x32xf32>
    %119 = arith.negf %118 : vector<8x32xf32>
    %120 = math.exp %119 : vector<8x32xf32>
    %cst_54 = arith.constant 1.000000e+00 : f32
    %121 = vector.broadcast %cst_54 : f32 to vector<8x32xf32>
    %122 = arith.addf %121, %120 : vector<8x32xf32>
    %123 = arith.divf %121, %122 : vector<8x32xf32>
    %124 = vector.extract_strided_slice %117 {offsets = [0, 32], sizes = [8, 32], strides = [1, 1]} : vector<8x128xf32> to vector<8x32xf32>
    %125 = arith.negf %124 : vector<8x32xf32>
    %126 = math.exp %125 : vector<8x32xf32>
    %cst_55 = arith.constant 1.000000e+00 : f32
    %127 = vector.broadcast %cst_55 : f32 to vector<8x32xf32>
    %128 = arith.addf %127, %126 : vector<8x32xf32>
    %129 = arith.divf %127, %128 : vector<8x32xf32>
    %130 = vector.extract_strided_slice %117 {offsets = [0, 64], sizes = [8, 32], strides = [1, 1]} : vector<8x128xf32> to vector<8x32xf32>
    %131 = math.tanh %130 : vector<8x32xf32>
    %132 = vector.extract_strided_slice %117 {offsets = [0, 96], sizes = [8, 32], strides = [1, 1]} : vector<8x128xf32> to vector<8x32xf32>
    %133 = arith.negf %132 : vector<8x32xf32>
    %134 = math.exp %133 : vector<8x32xf32>
    %cst_56 = arith.constant 1.000000e+00 : f32
    %135 = vector.broadcast %cst_56 : f32 to vector<8x32xf32>
    %136 = arith.addf %135, %134 : vector<8x32xf32>
    %137 = arith.divf %135, %136 : vector<8x32xf32>
    %138 = arith.mulf %129, %97 : vector<8x32xf32>
    %139 = arith.mulf %123, %131 : vector<8x32xf32>
    %140 = arith.addf %138, %139 : vector<8x32xf32>
    %141 = math.tanh %140 : vector<8x32xf32>
    %142 = arith.mulf %137, %141 : vector<8x32xf32>
    %cst_57 = arith.constant dense<0.000000e+00> : vector<8x16xf32>
    %143 = tpu.matmul %142, %13, %cst_57 {dimension_numbers = #tpu.dot_dimension_numbers<[1], [0], [0], [1], [0, 0, 1, 1], [], []>} : vector<8x32xf32>, vector<32x16xf32>, vector<8x16xf32> -> vector<8x16xf32>
    %144 = arith.index_cast %107 : i32 to index
    %c0_58 = arith.constant 0 : index
    %145 = vector.load %arg14[%144, %c0_58] : memref<64x16xf32, #tpu.memory_space<vmem>>, vector<8x16xf32>
    %146 = arith.addf %143, %145 : vector<8x16xf32>
    %147 = arith.index_cast %107 : i32 to index
    %c0_59 = arith.constant 0 : index
    %148 = vector.load %arg13[%147, %c0_59] : memref<64x16xf32, #tpu.memory_space<vmem>>, vector<8x16xf32>
    tpu.vector_store %arg13[%147, %c0_59], %146 {strides = array<i32>} : memref<64x16xf32, #tpu.memory_space<vmem>>, vector<8x16xf32>,
    %c3_i32 = arith.constant 3 : i32
    %c8_i32_60 = arith.constant 8 : i32
    %149 = arith.muli %c3_i32, %c8_i32_60 : i32
    %150 = tpu.assume_multiple %149, 8 : i32
    %151 = arith.index_cast %c3_i32 : i32 to index
    %152 = memref.load %arg1[%151] : memref<8xi32, #tpu.memory_space<smem>>
    %c1_i32_61 = arith.constant 1 : i32
    %153 = arith.cmpi eq, %152, %c1_i32_61 : i32
    %154 = arith.index_cast %150 : i32 to index
    %c0_62 = arith.constant 0 : index
    %155 = vector.load %arg15[%154, %c0_62] : memref<64x128xf32, #tpu.memory_space<vmem>>, vector<8x128xf32>
    %cst_63 = arith.constant dense<0.000000e+00> : vector<8x128xf32>
    %156 = tpu.matmul %146, %11, %cst_63 {dimension_numbers = #tpu.dot_dimension_numbers<[1], [0], [0], [1], [0, 0, 1, 1], [], []>} : vector<8x16xf32>, vector<16x128xf32>, vector<8x128xf32> -> vector<8x128xf32>
    %157 = arith.select %153, %155, %156 : vector<8x128xf32>
    %cst_64 = arith.constant dense<0.000000e+00> : vector<8x128xf32>
    %158 = tpu.matmul %142, %12, %cst_64 {dimension_numbers = #tpu.dot_dimension_numbers<[1], [0], [0], [1], [0, 0, 1, 1], [], []>} : vector<8x32xf32>, vector<32x128xf32>, vector<8x128xf32> -> vector<8x128xf32>
    %159 = arith.addf %157, %158 : vector<8x128xf32>
    %160 = arith.addf %159, %16 : vector<8x128xf32>
    %161 = vector.extract_strided_slice %160 {offsets = [0, 0], sizes = [8, 32], strides = [1, 1]} : vector<8x128xf32> to vector<8x32xf32>
    %162 = arith.negf %161 : vector<8x32xf32>
    %163 = math.exp %162 : vector<8x32xf32>
    %cst_65 = arith.constant 1.000000e+00 : f32
    %164 = vector.broadcast %cst_65 : f32 to vector<8x32xf32>
    %165 = arith.addf %164, %163 : vector<8x32xf32>
    %166 = arith.divf %164, %165 : vector<8x32xf32>
    %167 = vector.extract_strided_slice %160 {offsets = [0, 32], sizes = [8, 32], strides = [1, 1]} : vector<8x128xf32> to vector<8x32xf32>
    %168 = arith.negf %167 : vector<8x32xf32>
    %169 = math.exp %168 : vector<8x32xf32>
    %cst_66 = arith.constant 1.000000e+00 : f32
    %170 = vector.broadcast %cst_66 : f32 to vector<8x32xf32>
    %171 = arith.addf %170, %169 : vector<8x32xf32>
    %172 = arith.divf %170, %171 : vector<8x32xf32>
    %173 = vector.extract_strided_slice %160 {offsets = [0, 64], sizes = [8, 32], strides = [1, 1]} : vector<8x128xf32> to vector<8x32xf32>
    %174 = math.tanh %173 : vector<8x32xf32>
    %175 = vector.extract_strided_slice %160 {offsets = [0, 96], sizes = [8, 32], strides = [1, 1]} : vector<8x128xf32> to vector<8x32xf32>
    %176 = arith.negf %175 : vector<8x32xf32>
    %177 = math.exp %176 : vector<8x32xf32>
    %cst_67 = arith.constant 1.000000e+00 : f32
    %178 = vector.broadcast %cst_67 : f32 to vector<8x32xf32>
    %179 = arith.addf %178, %177 : vector<8x32xf32>
    %180 = arith.divf %178, %179 : vector<8x32xf32>
    %181 = arith.mulf %172, %140 : vector<8x32xf32>
    %182 = arith.mulf %166, %174 : vector<8x32xf32>
    %183 = arith.addf %181, %182 : vector<8x32xf32>
    %184 = math.tanh %183 : vector<8x32xf32>
    %185 = arith.mulf %180, %184 : vector<8x32xf32>
    %cst_68 = arith.constant dense<0.000000e+00> : vector<8x16xf32>
    %186 = tpu.matmul %185, %13, %cst_68 {dimension_numbers = #tpu.dot_dimension_numbers<[1], [0], [0], [1], [0, 0, 1, 1], [], []>} : vector<8x32xf32>, vector<32x16xf32>, vector<8x16xf32> -> vector<8x16xf32>
    %187 = arith.index_cast %150 : i32 to index
    %c0_69 = arith.constant 0 : index
    %188 = vector.load %arg14[%187, %c0_69] : memref<64x16xf32, #tpu.memory_space<vmem>>, vector<8x16xf32>
    %189 = arith.addf %186, %188 : vector<8x16xf32>
    %190 = arith.index_cast %150 : i32 to index
    %c0_70 = arith.constant 0 : index
    %191 = vector.load %arg13[%190, %c0_70] : memref<64x16xf32, #tpu.memory_space<vmem>>, vector<8x16xf32>
    tpu.vector_store %arg13[%190, %c0_70], %189 {strides = array<i32>} : memref<64x16xf32, #tpu.memory_space<vmem>>, vector<8x16xf32>,
    %c4_i32 = arith.constant 4 : i32
    %c8_i32_71 = arith.constant 8 : i32
    %192 = arith.muli %c4_i32, %c8_i32_71 : i32
    %193 = tpu.assume_multiple %192, 8 : i32
    %194 = arith.index_cast %c4_i32 : i32 to index
    %195 = memref.load %arg1[%194] : memref<8xi32, #tpu.memory_space<smem>>
    %c1_i32_72 = arith.constant 1 : i32
    %196 = arith.cmpi eq, %195, %c1_i32_72 : i32
    %197 = arith.index_cast %193 : i32 to index
    %c0_73 = arith.constant 0 : index
    %198 = vector.load %arg15[%197, %c0_73] : memref<64x128xf32, #tpu.memory_space<vmem>>, vector<8x128xf32>
    %cst_74 = arith.constant dense<0.000000e+00> : vector<8x128xf32>
    %199 = tpu.matmul %189, %11, %cst_74 {dimension_numbers = #tpu.dot_dimension_numbers<[1], [0], [0], [1], [0, 0, 1, 1], [], []>} : vector<8x16xf32>, vector<16x128xf32>, vector<8x128xf32> -> vector<8x128xf32>
    %200 = arith.select %196, %198, %199 : vector<8x128xf32>
    %cst_75 = arith.constant dense<0.000000e+00> : vector<8x128xf32>
    %201 = tpu.matmul %185, %12, %cst_75 {dimension_numbers = #tpu.dot_dimension_numbers<[1], [0], [0], [1], [0, 0, 1, 1], [], []>} : vector<8x32xf32>, vector<32x128xf32>, vector<8x128xf32> -> vector<8x128xf32>
    %202 = arith.addf %200, %201 : vector<8x128xf32>
    %203 = arith.addf %202, %16 : vector<8x128xf32>
    %204 = vector.extract_strided_slice %203 {offsets = [0, 0], sizes = [8, 32], strides = [1, 1]} : vector<8x128xf32> to vector<8x32xf32>
    %205 = arith.negf %204 : vector<8x32xf32>
    %206 = math.exp %205 : vector<8x32xf32>
    %cst_76 = arith.constant 1.000000e+00 : f32
    %207 = vector.broadcast %cst_76 : f32 to vector<8x32xf32>
    %208 = arith.addf %207, %206 : vector<8x32xf32>
    %209 = arith.divf %207, %208 : vector<8x32xf32>
    %210 = vector.extract_strided_slice %203 {offsets = [0, 32], sizes = [8, 32], strides = [1, 1]} : vector<8x128xf32> to vector<8x32xf32>
    %211 = arith.negf %210 : vector<8x32xf32>
    %212 = math.exp %211 : vector<8x32xf32>
    %cst_77 = arith.constant 1.000000e+00 : f32
    %213 = vector.broadcast %cst_77 : f32 to vector<8x32xf32>
    %214 = arith.addf %213, %212 : vector<8x32xf32>
    %215 = arith.divf %213, %214 : vector<8x32xf32>
    %216 = vector.extract_strided_slice %203 {offsets = [0, 64], sizes = [8, 32], strides = [1, 1]} : vector<8x128xf32> to vector<8x32xf32>
    %217 = math.tanh %216 : vector<8x32xf32>
    %218 = vector.extract_strided_slice %203 {offsets = [0, 96], sizes = [8, 32], strides = [1, 1]} : vector<8x128xf32> to vector<8x32xf32>
    %219 = arith.negf %218 : vector<8x32xf32>
    %220 = math.exp %219 : vector<8x32xf32>
    %cst_78 = arith.constant 1.000000e+00 : f32
    %221 = vector.broadcast %cst_78 : f32 to vector<8x32xf32>
    %222 = arith.addf %221, %220 : vector<8x32xf32>
    %223 = arith.divf %221, %222 : vector<8x32xf32>
    %224 = arith.mulf %215, %183 : vector<8x32xf32>
    %225 = arith.mulf %209, %217 : vector<8x32xf32>
    %226 = arith.addf %224, %225 : vector<8x32xf32>
    %227 = math.tanh %226 : vector<8x32xf32>
    %228 = arith.mulf %223, %227 : vector<8x32xf32>
    %cst_79 = arith.constant dense<0.000000e+00> : vector<8x16xf32>
    %229 = tpu.matmul %228, %13, %cst_79 {dimension_numbers = #tpu.dot_dimension_numbers<[1], [0], [0], [1], [0, 0, 1, 1], [], []>} : vector<8x32xf32>, vector<32x16xf32>, vector<8x16xf32> -> vector<8x16xf32>
    %230 = arith.index_cast %193 : i32 to index
    %c0_80 = arith.constant 0 : index
    %231 = vector.load %arg14[%230, %c0_80] : memref<64x16xf32, #tpu.memory_space<vmem>>, vector<8x16xf32>
    %232 = arith.addf %229, %231 : vector<8x16xf32>
    %233 = arith.index_cast %193 : i32 to index
    %c0_81 = arith.constant 0 : index
    %234 = vector.load %arg13[%233, %c0_81] : memref<64x16xf32, #tpu.memory_space<vmem>>, vector<8x16xf32>
    tpu.vector_store %arg13[%233, %c0_81], %232 {strides = array<i32>} : memref<64x16xf32, #tpu.memory_space<vmem>>, vector<8x16xf32>,
    %c5_i32 = arith.constant 5 : i32
    %c8_i32_82 = arith.constant 8 : i32
    %235 = arith.muli %c5_i32, %c8_i32_82 : i32
    %236 = tpu.assume_multiple %235, 8 : i32
    %237 = arith.index_cast %c5_i32 : i32 to index
    %238 = memref.load %arg1[%237] : memref<8xi32, #tpu.memory_space<smem>>
    %c1_i32_83 = arith.constant 1 : i32
    %239 = arith.cmpi eq, %238, %c1_i32_83 : i32
    %240 = arith.index_cast %236 : i32 to index
    %c0_84 = arith.constant 0 : index
    %241 = vector.load %arg15[%240, %c0_84] : memref<64x128xf32, #tpu.memory_space<vmem>>, vector<8x128xf32>
    %cst_85 = arith.constant dense<0.000000e+00> : vector<8x128xf32>
    %242 = tpu.matmul %232, %11, %cst_85 {dimension_numbers = #tpu.dot_dimension_numbers<[1], [0], [0], [1], [0, 0, 1, 1], [], []>} : vector<8x16xf32>, vector<16x128xf32>, vector<8x128xf32> -> vector<8x128xf32>
    %243 = arith.select %239, %241, %242 : vector<8x128xf32>
    %cst_86 = arith.constant dense<0.000000e+00> : vector<8x128xf32>
    %244 = tpu.matmul %228, %12, %cst_86 {dimension_numbers = #tpu.dot_dimension_numbers<[1], [0], [0], [1], [0, 0, 1, 1], [], []>} : vector<8x32xf32>, vector<32x128xf32>, vector<8x128xf32> -> vector<8x128xf32>
    %245 = arith.addf %243, %244 : vector<8x128xf32>
    %246 = arith.addf %245, %16 : vector<8x128xf32>
    %247 = vector.extract_strided_slice %246 {offsets = [0, 0], sizes = [8, 32], strides = [1, 1]} : vector<8x128xf32> to vector<8x32xf32>
    %248 = arith.negf %247 : vector<8x32xf32>
    %249 = math.exp %248 : vector<8x32xf32>
    %cst_87 = arith.constant 1.000000e+00 : f32
    %250 = vector.broadcast %cst_87 : f32 to vector<8x32xf32>
    %251 = arith.addf %250, %249 : vector<8x32xf32>
    %252 = arith.divf %250, %251 : vector<8x32xf32>
    %253 = vector.extract_strided_slice %246 {offsets = [0, 32], sizes = [8, 32], strides = [1, 1]} : vector<8x128xf32> to vector<8x32xf32>
    %254 = arith.negf %253 : vector<8x32xf32>
    %255 = math.exp %254 : vector<8x32xf32>
    %cst_88 = arith.constant 1.000000e+00 : f32
    %256 = vector.broadcast %cst_88 : f32 to vector<8x32xf32>
    %257 = arith.addf %256, %255 : vector<8x32xf32>
    %258 = arith.divf %256, %257 : vector<8x32xf32>
    %259 = vector.extract_strided_slice %246 {offsets = [0, 64], sizes = [8, 32], strides = [1, 1]} : vector<8x128xf32> to vector<8x32xf32>
    %260 = math.tanh %259 : vector<8x32xf32>
    %261 = vector.extract_strided_slice %246 {offsets = [0, 96], sizes = [8, 32], strides = [1, 1]} : vector<8x128xf32> to vector<8x32xf32>
    %262 = arith.negf %261 : vector<8x32xf32>
    %263 = math.exp %262 : vector<8x32xf32>
    %cst_89 = arith.constant 1.000000e+00 : f32
    %264 = vector.broadcast %cst_89 : f32 to vector<8x32xf32>
    %265 = arith.addf %264, %263 : vector<8x32xf32>
    %266 = arith.divf %264, %265 : vector<8x32xf32>
    %267 = arith.mulf %258, %226 : vector<8x32xf32>
    %268 = arith.mulf %252, %260 : vector<8x32xf32>
    %269 = arith.addf %267, %268 : vector<8x32xf32>
    %270 = math.tanh %269 : vector<8x32xf32>
    %271 = arith.mulf %266, %270 : vector<8x32xf32>
    %cst_90 = arith.constant dense<0.000000e+00> : vector<8x16xf32>
    %272 = tpu.matmul %271, %13, %cst_90 {dimension_numbers = #tpu.dot_dimension_numbers<[1], [0], [0], [1], [0, 0, 1, 1], [], []>} : vector<8x32xf32>, vector<32x16xf32>, vector<8x16xf32> -> vector<8x16xf32>
    %273 = arith.index_cast %236 : i32 to index
    %c0_91 = arith.constant 0 : index
    %274 = vector.load %arg14[%273, %c0_91] : memref<64x16xf32, #tpu.memory_space<vmem>>, vector<8x16xf32>
    %275 = arith.addf %272, %274 : vector<8x16xf32>
    %276 = arith.index_cast %236 : i32 to index
    %c0_92 = arith.constant 0 : index
    %277 = vector.load %arg13[%276, %c0_92] : memref<64x16xf32, #tpu.memory_space<vmem>>, vector<8x16xf32>
    tpu.vector_store %arg13[%276, %c0_92], %275 {strides = array<i32>} : memref<64x16xf32, #tpu.memory_space<vmem>>, vector<8x16xf32>,
    %c6_i32 = arith.constant 6 : i32
    %c8_i32_93 = arith.constant 8 : i32
    %278 = arith.muli %c6_i32, %c8_i32_93 : i32
    %279 = tpu.assume_multiple %278, 8 : i32
    %280 = arith.index_cast %c6_i32 : i32 to index
    %281 = memref.load %arg1[%280] : memref<8xi32, #tpu.memory_space<smem>>
    %c1_i32_94 = arith.constant 1 : i32
    %282 = arith.cmpi eq, %281, %c1_i32_94 : i32
    %283 = arith.index_cast %279 : i32 to index
    %c0_95 = arith.constant 0 : index
    %284 = vector.load %arg15[%283, %c0_95] : memref<64x128xf32, #tpu.memory_space<vmem>>, vector<8x128xf32>
    %cst_96 = arith.constant dense<0.000000e+00> : vector<8x128xf32>
    %285 = tpu.matmul %275, %11, %cst_96 {dimension_numbers = #tpu.dot_dimension_numbers<[1], [0], [0], [1], [0, 0, 1, 1], [], []>} : vector<8x16xf32>, vector<16x128xf32>, vector<8x128xf32> -> vector<8x128xf32>
    %286 = arith.select %282, %284, %285 : vector<8x128xf32>
    %cst_97 = arith.constant dense<0.000000e+00> : vector<8x128xf32>
    %287 = tpu.matmul %271, %12, %cst_97 {dimension_numbers = #tpu.dot_dimension_numbers<[1], [0], [0], [1], [0, 0, 1, 1], [], []>} : vector<8x32xf32>, vector<32x128xf32>, vector<8x128xf32> -> vector<8x128xf32>
    %288 = arith.addf %286, %287 : vector<8x128xf32>
    %289 = arith.addf %288, %16 : vector<8x128xf32>
    %290 = vector.extract_strided_slice %289 {offsets = [0, 0], sizes = [8, 32], strides = [1, 1]} : vector<8x128xf32> to vector<8x32xf32>
    %291 = arith.negf %290 : vector<8x32xf32>
    %292 = math.exp %291 : vector<8x32xf32>
    %cst_98 = arith.constant 1.000000e+00 : f32
    %293 = vector.broadcast %cst_98 : f32 to vector<8x32xf32>
    %294 = arith.addf %293, %292 : vector<8x32xf32>
    %295 = arith.divf %293, %294 : vector<8x32xf32>
    %296 = vector.extract_strided_slice %289 {offsets = [0, 32], sizes = [8, 32], strides = [1, 1]} : vector<8x128xf32> to vector<8x32xf32>
    %297 = arith.negf %296 : vector<8x32xf32>
    %298 = math.exp %297 : vector<8x32xf32>
    %cst_99 = arith.constant 1.000000e+00 : f32
    %299 = vector.broadcast %cst_99 : f32 to vector<8x32xf32>
    %300 = arith.addf %299, %298 : vector<8x32xf32>
    %301 = arith.divf %299, %300 : vector<8x32xf32>
    %302 = vector.extract_strided_slice %289 {offsets = [0, 64], sizes = [8, 32], strides = [1, 1]} : vector<8x128xf32> to vector<8x32xf32>
    %303 = math.tanh %302 : vector<8x32xf32>
    %304 = vector.extract_strided_slice %289 {offsets = [0, 96], sizes = [8, 32], strides = [1, 1]} : vector<8x128xf32> to vector<8x32xf32>
    %305 = arith.negf %304 : vector<8x32xf32>
    %306 = math.exp %305 : vector<8x32xf32>
    %cst_100 = arith.constant 1.000000e+00 : f32
    %307 = vector.broadcast %cst_100 : f32 to vector<8x32xf32>
    %308 = arith.addf %307, %306 : vector<8x32xf32>
    %309 = arith.divf %307, %308 : vector<8x32xf32>
    %310 = arith.mulf %301, %269 : vector<8x32xf32>
    %311 = arith.mulf %295, %303 : vector<8x32xf32>
    %312 = arith.addf %310, %311 : vector<8x32xf32>
    %313 = math.tanh %312 : vector<8x32xf32>
    %314 = arith.mulf %309, %313 : vector<8x32xf32>
    %cst_101 = arith.constant dense<0.000000e+00> : vector<8x16xf32>
    %315 = tpu.matmul %314, %13, %cst_101 {dimension_numbers = #tpu.dot_dimension_numbers<[1], [0], [0], [1], [0, 0, 1, 1], [], []>} : vector<8x32xf32>, vector<32x16xf32>, vector<8x16xf32> -> vector<8x16xf32>
    %316 = arith.index_cast %279 : i32 to index
    %c0_102 = arith.constant 0 : index
    %317 = vector.load %arg14[%316, %c0_102] : memref<64x16xf32, #tpu.memory_space<vmem>>, vector<8x16xf32>
    %318 = arith.addf %315, %317 : vector<8x16xf32>
    %319 = arith.index_cast %279 : i32 to index
    %c0_103 = arith.constant 0 : index
    %320 = vector.load %arg13[%319, %c0_103] : memref<64x16xf32, #tpu.memory_space<vmem>>, vector<8x16xf32>
    tpu.vector_store %arg13[%319, %c0_103], %318 {strides = array<i32>} : memref<64x16xf32, #tpu.memory_space<vmem>>, vector<8x16xf32>,
    %c7_i32 = arith.constant 7 : i32
    %c8_i32_104 = arith.constant 8 : i32
    %321 = arith.muli %c7_i32, %c8_i32_104 : i32
    %322 = tpu.assume_multiple %321, 8 : i32
    %323 = arith.index_cast %c7_i32 : i32 to index
    %324 = memref.load %arg1[%323] : memref<8xi32, #tpu.memory_space<smem>>
    %c1_i32_105 = arith.constant 1 : i32
    %325 = arith.cmpi eq, %324, %c1_i32_105 : i32
    %326 = arith.index_cast %322 : i32 to index
    %c0_106 = arith.constant 0 : index
    %327 = vector.load %arg15[%326, %c0_106] : memref<64x128xf32, #tpu.memory_space<vmem>>, vector<8x128xf32>
    %cst_107 = arith.constant dense<0.000000e+00> : vector<8x128xf32>
    %328 = tpu.matmul %318, %11, %cst_107 {dimension_numbers = #tpu.dot_dimension_numbers<[1], [0], [0], [1], [0, 0, 1, 1], [], []>} : vector<8x16xf32>, vector<16x128xf32>, vector<8x128xf32> -> vector<8x128xf32>
    %329 = arith.select %325, %327, %328 : vector<8x128xf32>
    %cst_108 = arith.constant dense<0.000000e+00> : vector<8x128xf32>
    %330 = tpu.matmul %314, %12, %cst_108 {dimension_numbers = #tpu.dot_dimension_numbers<[1], [0], [0], [1], [0, 0, 1, 1], [], []>} : vector<8x32xf32>, vector<32x128xf32>, vector<8x128xf32> -> vector<8x128xf32>
    %331 = arith.addf %329, %330 : vector<8x128xf32>
    %332 = arith.addf %331, %16 : vector<8x128xf32>
    %333 = vector.extract_strided_slice %332 {offsets = [0, 0], sizes = [8, 32], strides = [1, 1]} : vector<8x128xf32> to vector<8x32xf32>
    %334 = arith.negf %333 : vector<8x32xf32>
    %335 = math.exp %334 : vector<8x32xf32>
    %cst_109 = arith.constant 1.000000e+00 : f32
    %336 = vector.broadcast %cst_109 : f32 to vector<8x32xf32>
    %337 = arith.addf %336, %335 : vector<8x32xf32>
    %338 = arith.divf %336, %337 : vector<8x32xf32>
    %339 = vector.extract_strided_slice %332 {offsets = [0, 32], sizes = [8, 32], strides = [1, 1]} : vector<8x128xf32> to vector<8x32xf32>
    %340 = arith.negf %339 : vector<8x32xf32>
    %341 = math.exp %340 : vector<8x32xf32>
    %cst_110 = arith.constant 1.000000e+00 : f32
    %342 = vector.broadcast %cst_110 : f32 to vector<8x32xf32>
    %343 = arith.addf %342, %341 : vector<8x32xf32>
    %344 = arith.divf %342, %343 : vector<8x32xf32>
    %345 = vector.extract_strided_slice %332 {offsets = [0, 64], sizes = [8, 32], strides = [1, 1]} : vector<8x128xf32> to vector<8x32xf32>
    %346 = math.tanh %345 : vector<8x32xf32>
    %347 = vector.extract_strided_slice %332 {offsets = [0, 96], sizes = [8, 32], strides = [1, 1]} : vector<8x128xf32> to vector<8x32xf32>
    %348 = arith.negf %347 : vector<8x32xf32>
    %349 = math.exp %348 : vector<8x32xf32>
    %cst_111 = arith.constant 1.000000e+00 : f32
    %350 = vector.broadcast %cst_111 : f32 to vector<8x32xf32>
    %351 = arith.addf %350, %349 : vector<8x32xf32>
    %352 = arith.divf %350, %351 : vector<8x32xf32>
    %353 = arith.mulf %344, %312 : vector<8x32xf32>
    %354 = arith.mulf %338, %346 : vector<8x32xf32>
    %355 = arith.addf %353, %354 : vector<8x32xf32>
    %356 = math.tanh %355 : vector<8x32xf32>
    %357 = arith.mulf %352, %356 : vector<8x32xf32>
    %cst_112 = arith.constant dense<0.000000e+00> : vector<8x16xf32>
    %358 = tpu.matmul %357, %13, %cst_112 {dimension_numbers = #tpu.dot_dimension_numbers<[1], [0], [0], [1], [0, 0, 1, 1], [], []>} : vector<8x32xf32>, vector<32x16xf32>, vector<8x16xf32> -> vector<8x16xf32>
    %359 = arith.index_cast %322 : i32 to index
    %c0_113 = arith.constant 0 : index
    %360 = vector.load %arg14[%359, %c0_113] : memref<64x16xf32, #tpu.memory_space<vmem>>, vector<8x16xf32>
    %361 = arith.addf %358, %360 : vector<8x16xf32>
    %362 = arith.index_cast %322 : i32 to index
    %c0_114 = arith.constant 0 : index
    %363 = vector.load %arg13[%362, %c0_114] : memref<64x16xf32, #tpu.memory_space<vmem>>, vector<8x16xf32>
    tpu.vector_store %arg13[%362, %c0_114], %361 {strides = array<i32>} : memref<64x16xf32, #tpu.memory_space<vmem>>, vector<8x16xf32>,
    %c8_i32_115 = arith.constant 8 : i32
    return
  }
  func.func @transform_0(%arg0: i32, %arg1: memref<8xi32, #tpu.memory_space<smem>>) -> (i32, i32) {
    %c0_i32 = arith.constant 0 : i32
    %c0_i32_0 = arith.constant 0 : i32
    %c0_i32_1 = arith.constant 0 : i32
    return %c0_i32, %c0_i32_0 : i32, i32
  }
  func.func @transform_1(%arg0: i32, %arg1: memref<8xi32, #tpu.memory_space<smem>>) -> (i32, i32) {
    %c0_i32 = arith.constant 0 : i32
    %c0_i32_0 = arith.constant 0 : i32
    %c0_i32_1 = arith.constant 0 : i32
    return %c0_i32, %c0_i32_0 : i32, i32
  }
  func.func @transform_2(%arg0: i32, %arg1: memref<8xi32, #tpu.memory_space<smem>>) -> (i32, i32) {
    %c0_i32 = arith.constant 0 : i32
    %c0_i32_0 = arith.constant 0 : i32
    %c0_i32_1 = arith.constant 0 : i32
    return %c0_i32, %c0_i32_0 : i32, i32
  }
  func.func @transform_3(%arg0: i32, %arg1: memref<8xi32, #tpu.memory_space<smem>>) -> (i32, i32) {
    %c0_i32 = arith.constant 0 : i32
    %c0_i32_0 = arith.constant 0 : i32
    %c0_i32_1 = arith.constant 0 : i32
    return %c0_i32, %c0_i32_0 : i32, i32
  }
  func.func @transform_4(%arg0: i32, %arg1: memref<8xi32, #tpu.memory_space<smem>>) -> (i32, i32) {
    %c0_i32 = arith.constant 0 : i32
    %c0_i32_0 = arith.constant 0 : i32
    %c0_i32_1 = arith.constant 0 : i32
    return %c0_i32, %c0_i32_0 : i32, i32
  }
  func.func @transform_5(%arg0: i32, %arg1: memref<8xi32, #tpu.memory_space<smem>>) -> (i32, i32) {
    %c0_i32 = arith.constant 0 : i32
    %c0_i32_0 = arith.constant 0 : i32
    %c0_i32_1 = arith.constant 0 : i32
    return %c0_i32, %c0_i32_0 : i32, i32
  }
  func.func @transform_6(%arg0: i32, %arg1: memref<8xi32, #tpu.memory_space<smem>>) -> (i32, i32) {
    %c0_i32 = arith.constant 0 : i32
    %c0_i32_0 = arith.constant 0 : i32
    %c0_i32_1 = arith.constant 0 : i32
    return %c0_i32, %c0_i32_0 : i32, i32
  }
  func.func @transform_7(%arg0: i32, %arg1: memref<8xi32, #tpu.memory_space<smem>>) -> (i32, i32) {
    %c0_i32 = arith.constant 0 : i32
    %c0_i32_0 = arith.constant 0 : i32
    %c0_i32_1 = arith.constant 0 : i32
    return %c0_i32, %c0_i32_0 : i32, i32
  }
  func.func @transform_8(%arg0: i32, %arg1: memref<8xi32, #tpu.memory_space<smem>>) -> (i32, i32) {
    %c0_i32 = arith.constant 0 : i32
    %c0_i32_0 = arith.constant 0 : i32
    %c0_i32_1 = arith.constant 0 : i32
    return %c0_i32, %c0_i32_0 : i32, i32
  }
  func.func @transform_9(%arg0: i32, %arg1: memref<8xi32, #tpu.memory_space<smem>>) -> (i32, i32) {
    %c0_i32 = arith.constant 0 : i32
    %c0_i32_0 = arith.constant 0 : i32
    %c0_i32_1 = arith.constant 0 : i32
    return %c0_i32, %c0_i32_0 : i32, i32
  }
  func.func @transform_10(%arg0: i32, %arg1: memref<8xi32, #tpu.memory_space<smem>>) -> (i32, i32) {
    %c0_i32 = arith.constant 0 : i32
    %c0_i32_0 = arith.constant 0 : i32
    %c0_i32_1 = arith.constant 0 : i32
    return %c0_i32, %c0_i32_0 : i32, i32
  }
  func.func @transform_11(%arg0: i32, %arg1: memref<8xi32, #tpu.memory_space<smem>>) -> (i32, i32) {
    %c0_i32 = arith.constant 0 : i32
    %c0_i32_0 = arith.constant 0 : i32
    %c0_i32_1 = arith.constant 0 : i32
    return %c0_i32, %c0_i32_0 : i32, i32
  }
}

</mosaic_0001>

<llo_original>
// kernel: model_forward.1
$region0: #{model_forward.1}
  #allocation0 [shape = 'u32[]', space=smem, size = 0x4, offset = 0x4, fixed_abs, tag = 'smem constant byte address 0x4 - core index']
  #allocation1 [shape = 'u32[72,128]{1,0:T(1,128)}', space=vmem, size = 0x9000, scoped, tag = 'internal scratch']
  #allocation2 [shape = 'f32[64,16]{1,0:T(8,128)}', space=vmem, size = 0x8000, scoped, tag = 'scratch operand']
  #allocation3 [shape = 'f32[64,128]{1,0:T(8,128)}', space=vmem, size = 0x8000, scoped, tag = 'scratch operand']
  #allocation4 [shape = 's32[1]{0}', space=sflag, size = 0x4, scoped, tag = 'scoped memory for model_forward.1']
  #allocation5 [shape = 'u8[512]{0}', space=smem, size = 0x200, scoped, tag = 'prefetched SMEM operand 0']
  %s0 = inlined_call_operand.vmem [shape: s32[8], index: 0, kind: input, shape index: {}]
  %s1 = inlined_call_operand.vmem [shape: f32[64,16], index: 1, kind: input, shape index: {}]
  %s2 = inlined_call_operand.vmem [shape: f32[64,16], index: 2, kind: input, shape index: {}]
  %s3 = inlined_call_operand.vmem [shape: f32[8,32], index: 3, kind: input, shape index: {}]
  %s4 = inlined_call_operand.vmem [shape: f32[8,32], index: 4, kind: input, shape index: {}]
  %s5 = inlined_call_operand.vmem [shape: f32[8,16], index: 5, kind: input, shape index: {}]
  %s6 = inlined_call_operand.vmem [shape: f32[16,16], index: 6, kind: input, shape index: {}]
  %s7 = inlined_call_operand.vmem [shape: f32[1,16], index: 7, kind: input, shape index: {}]
  %s8 = inlined_call_operand.vmem [shape: f32[16,128], index: 8, kind: input, shape index: {}]
  %s9 = inlined_call_operand.vmem [shape: f32[32,128], index: 9, kind: input, shape index: {}]
  %s10 = inlined_call_operand.vmem [shape: f32[1,128], index: 10, kind: input, shape index: {}]
  %s11 = inlined_call_operand.vmem [shape: f32[32,16], index: 11, kind: input, shape index: {}]
  %s12 = inlined_call_operand.vmem [shape: f32[64,16], index: 12, kind: output, shape index: {}]
  %s13 = sld [smem:[#allocation0]]
  $region54: #{model_forward.1} parent=0
    _
  %s15 = ssub.s32 1, %s13
  %s16 = scalar_select 0, %s15, %s13
  %s18 = sshll.u32 %s0, 4
  %s19 = int_to_ptr.vmem [resolvable:$true] %s18
  %21 = dma.vmem_to_smem %s19, 16, [#allocation5], [#allocation4]
  %23 = dma.done [#allocation4], 16
  %24 = sfence
  // Predicated region
  $region2: #{model_forward.1} parent=0 // pred_check
    _
  $region3: #{model_forward.1} parent=0 // pred_check_branch
    %26 = sbr.rel (0) target = $region5
  $region4: #{model_forward.1} parent=0 // pred_region
    _
  $region5: #{model_forward.1} parent=0 // pred_fallthru
    _
  // Predicated region
  $region6: #{model_forward.1} parent=0 // pred_check
    _
  $region7: #{model_forward.1} parent=0 // pred_check_branch
    %28 = sbr.rel (0) target = $region9
  $region8: #{model_forward.1} parent=0 // pred_region
    _
  $region9: #{model_forward.1} parent=0 // pred_fallthru
    _
  // Predicated region
  $region10: #{model_forward.1} parent=0 // pred_check
    _
  $region11: #{model_forward.1} parent=0 // pred_check_branch
    %30 = sbr.rel (0) target = $region13
  $region12: #{model_forward.1} parent=0 // pred_region
    _
  $region13: #{model_forward.1} parent=0 // pred_fallthru
    _
  // Predicated region
  $region14: #{model_forward.1} parent=0 // pred_check
    _
  $region15: #{model_forward.1} parent=0 // pred_check_branch
    %32 = sbr.rel (0) target = $region17
  $region16: #{model_forward.1} parent=0 // pred_region
    _
  $region17: #{model_forward.1} parent=0 // pred_fallthru
    _
  // Predicated region
  $region18: #{model_forward.1} parent=0 // pred_check
    _
  $region19: #{model_forward.1} parent=0 // pred_check_branch
    %34 = sbr.rel (0) target = $region21
  $region20: #{model_forward.1} parent=0 // pred_region
    _
  $region21: #{model_forward.1} parent=0 // pred_fallthru
    _
  // Predicated region
  $region22: #{model_forward.1} parent=0 // pred_check
    _
  $region23: #{model_forward.1} parent=0 // pred_check_branch
    %36 = sbr.rel (0) target = $region25
  $region24: #{model_forward.1} parent=0 // pred_region
    _
  $region25: #{model_forward.1} parent=0 // pred_fallthru
    _
  // Predicated region
  $region26: #{model_forward.1} parent=0 // pred_check
    _
  $region27: #{model_forward.1} parent=0 // pred_check_branch
    %38 = sbr.rel (0) target = $region29
  $region28: #{model_forward.1} parent=0 // pred_region
    _
  $region29: #{model_forward.1} parent=0 // pred_fallthru
    _
  // Predicated region
  $region30: #{model_forward.1} parent=0 // pred_check
    _
  $region31: #{model_forward.1} parent=0 // pred_check_branch
    %40 = sbr.rel (0) target = $region33
  $region32: #{model_forward.1} parent=0 // pred_region
    _
  $region33: #{model_forward.1} parent=0 // pred_fallthru
    _
  // Predicated region
  $region34: #{model_forward.1} parent=0 // pred_check
    _
  $region35: #{model_forward.1} parent=0 // pred_check_branch
    %42 = sbr.rel (0) target = $region37
  $region36: #{model_forward.1} parent=0 // pred_region
    _
  $region37: #{model_forward.1} parent=0 // pred_fallthru
    _
  // Predicated region
  $region38: #{model_forward.1} parent=0 // pred_check
    _
  $region39: #{model_forward.1} parent=0 // pred_check_branch
    %44 = sbr.rel (0) target = $region41
  $region40: #{model_forward.1} parent=0 // pred_region
    _
  $region41: #{model_forward.1} parent=0 // pred_fallthru
    _
  // Predicated region
  $region42: #{model_forward.1} parent=0 // pred_check
    _
  $region43: #{model_forward.1} parent=0 // pred_check_branch
    %46 = sbr.rel (0) target = $region45
  $region44: #{model_forward.1} parent=0 // pred_region
    _
  $region45: #{model_forward.1} parent=0 // pred_fallthru
    _
  %v47 = vld [vmem:[%s1] sm:$0xff]
  %v48 = vld [vmem:[%s1 + $0x8] sm:$0xff]
  %v49 = vld [vmem:[%s1 + $0x10] sm:$0xff]
  %v50 = vld [vmem:[%s1 + $0x18] sm:$0xff]
  %v51 = vld [vmem:[%s1 + $0x20] sm:$0xff]
  %v52 = vld [vmem:[%s1 + $0x28] sm:$0xff]
  %v53 = vld [vmem:[%s1 + $0x30] sm:$0xff]
  %v54 = vld [vmem:[%s1 + $0x38] sm:$0xff]
  %v55 = vld [vmem:[%s6] sm:$0xff]
  %v56 = vld [vmem:[%s6 + $0x8] sm:$0xff]
  %v57 = vld [vmem:[%s7] sm:$0x1]
  %v59 = vperm.slane %v57, 0
  %vm61 = vcmask 130048
  %v63 = vsel %vm61, %v47, 0
  %v66 = vsel %vm61, %v48, 0
  %v69 = vsel %vm61, %v49, 0
  %v72 = vsel %vm61, %v50, 0
  %v75 = vsel %vm61, %v51, 0
  %v78 = vsel %vm61, %v52, 0
  %v81 = vsel %vm61, %v53, 0
  %v84 = vsel %vm61, %v54, 0
  %86 = vmatpush.msra.mxu0 0.0
  %87 = vmatpush.msra.mxu0 0.0
  %88 = vmatpush.msra.mxu0 0.0
  %89 = vmatpush.msra.mxu0 0.0
  %90 = vmatpush.msra.mxu0 0.0
  %91 = vmatpush.msra.mxu0 0.0
  %92 = vmatpush.msra.mxu0 0.0
  %93 = vmatpush.msra.mxu0 0.0
  %94 = vmatpush.msra.mxu0 0.0
  %95 = vmatpush.msra.mxu0 0.0
  %96 = vmatpush.msra.mxu0 0.0
  %97 = vmatpush.msra.mxu0 0.0
  %98 = vmatpush.msra.mxu0 0.0
  %99 = vmatpush.msra.mxu0 0.0
  %100 = vmatpush.msra.mxu0 %v56
  %101 = vmatpush.msra.mxu0 %v55
  %102 = vmatmul.f32.gmra.mxu0 %v63
  %v103 = vpop.f32.mrf.mxu0
  %v104 = vadd.f32 %v59, %v103
  %105 = vmatmul.f32.gmra.mxu0 %v66
  %v106 = vpop.f32.mrf.mxu0
  %v107 = vadd.f32 %v59, %v106
  %108 = vmatmul.f32.gmra.mxu0 %v69
  %v109 = vpop.f32.mrf.mxu0
  %v110 = vadd.f32 %v59, %v109
  %111 = vmatmul.f32.gmra.mxu0 %v72
  %v112 = vpop.f32.mrf.mxu0
  %v113 = vadd.f32 %v59, %v112
  %114 = vmatmul.f32.gmra.mxu0 %v75
  %v115 = vpop.f32.mrf.mxu0
  %v116 = vadd.f32 %v59, %v115
  %117 = vmatmul.f32.gmra.mxu0 %v78
  %v118 = vpop.f32.mrf.mxu0
  %v119 = vadd.f32 %v59, %v118
  %120 = vmatmul.f32.gmra.mxu0 %v81
  %v121 = vpop.f32.mrf.mxu0
  %v122 = vadd.f32 %v59, %v121
  %123 = vmatmul.f32.gmra.mxu0 %v84
  %v124 = vpop.f32.mrf.mxu0
  %v125 = vadd.f32 %v59, %v124
  %126 = vdwg.mxu0
  %127 = vst.msk [vmem:[#allocation2] sm:$0xff] %vm61, %v104
  %128 = vst.msk [vmem:[#allocation2 + $0x8] sm:$0xff] %vm61, %v107
  %129 = vst.msk [vmem:[#allocation2 + $0x10] sm:$0xff] %vm61, %v110
  %130 = vst.msk [vmem:[#allocation2 + $0x18] sm:$0xff] %vm61, %v113
  %131 = vst.msk [vmem:[#allocation2 + $0x20] sm:$0xff] %vm61, %v116
  %132 = vst.msk [vmem:[#allocation2 + $0x28] sm:$0xff] %vm61, %v119
  %133 = vst.msk [vmem:[#allocation2 + $0x30] sm:$0xff] %vm61, %v122
  %134 = vst.msk [vmem:[#allocation2 + $0x38] sm:$0xff] %vm61, %v125
  %v135 = vld [vmem:[%s2] sm:$0xff]
  %v136 = vld [vmem:[%s2 + $0x8] sm:$0xff]
  %v137 = vld [vmem:[%s2 + $0x10] sm:$0xff]
  %v138 = vld [vmem:[%s2 + $0x18] sm:$0xff]
  %v139 = vld [vmem:[%s2 + $0x20] sm:$0xff]
  %v140 = vld [vmem:[%s2 + $0x28] sm:$0xff]
  %v141 = vld [vmem:[%s2 + $0x30] sm:$0xff]
  %v142 = vld [vmem:[%s2 + $0x38] sm:$0xff]
  %v143 = vld [vmem:[%s8] sm:$0xff]
  %v144 = vld [vmem:[%s8 + $0x8] sm:$0xff]
  %v146 = vsel %vm61, %v135, 0
  %v149 = vsel %vm61, %v136, 0
  %v152 = vsel %vm61, %v137, 0
  %v155 = vsel %vm61, %v138, 0
  %v158 = vsel %vm61, %v139, 0
  %v161 = vsel %vm61, %v140, 0
  %v164 = vsel %vm61, %v141, 0
  %v167 = vsel %vm61, %v142, 0
  %169 = vmatpush.msra.mxu0 0.0
  %170 = vmatpush.msra.mxu0 0.0
  %171 = vmatpush.msra.mxu0 0.0
  %172 = vmatpush.msra.mxu0 0.0
  %173 = vmatpush.msra.mxu0 0.0
  %174 = vmatpush.msra.mxu0 0.0
  %175 = vmatpush.msra.mxu0 0.0
  %176 = vmatpush.msra.mxu0 0.0
  %177 = vmatpush.msra.mxu0 0.0
  %178 = vmatpush.msra.mxu0 0.0
  %179 = vmatpush.msra.mxu0 0.0
  %180 = vmatpush.msra.mxu0 0.0
  %181 = vmatpush.msra.mxu0 0.0
  %182 = vmatpush.msra.mxu0 0.0
  %183 = vmatpush.msra.mxu0 %v144
  %184 = vmatpush.msra.mxu0 %v143
  %185 = vmatmul.f32.gmra.mxu0 %v146
  %v186 = vpop.f32.mrf.mxu0
  %v187 = vadd.f32 0.0, %v186
  %188 = vmatmul.f32.gmra.mxu0 %v149
  %v189 = vpop.f32.mrf.mxu0
  %v190 = vadd.f32 0.0, %v189
  %191 = vmatmul.f32.gmra.mxu0 %v152
  %v192 = vpop.f32.mrf.mxu0
  %v193 = vadd.f32 0.0, %v192
  %194 = vmatmul.f32.gmra.mxu0 %v155
  %v195 = vpop.f32.mrf.mxu0
  %v196 = vadd.f32 0.0, %v195
  %197 = vmatmul.f32.gmra.mxu0 %v158
  %v198 = vpop.f32.mrf.mxu0
  %v199 = vadd.f32 0.0, %v198
  %200 = vmatmul.f32.gmra.mxu0 %v161
  %v201 = vpop.f32.mrf.mxu0
  %v202 = vadd.f32 0.0, %v201
  %203 = vmatmul.f32.gmra.mxu0 %v164
  %v204 = vpop.f32.mrf.mxu0
  %v205 = vadd.f32 0.0, %v204
  %206 = vmatmul.f32.gmra.mxu0 %v167
  %v207 = vpop.f32.mrf.mxu0
  %v208 = vadd.f32 0.0, %v207
  %209 = vdwg.mxu0
  %210 = vst [vmem:[#allocation3] sm:$0xff] %v187
  %211 = vst [vmem:[#allocation3 + $0x8] sm:$0xff] %v190
  %212 = vst [vmem:[#allocation3 + $0x10] sm:$0xff] %v193
  %213 = vst [vmem:[#allocation3 + $0x18] sm:$0xff] %v196
  %214 = vst [vmem:[#allocation3 + $0x20] sm:$0xff] %v199
  %215 = vst [vmem:[#allocation3 + $0x28] sm:$0xff] %v202
  %216 = vst [vmem:[#allocation3 + $0x30] sm:$0xff] %v205
  %217 = vst [vmem:[#allocation3 + $0x38] sm:$0xff] %v208
  %v218 = vld [vmem:[%s8] sm:$0xff]
  %v219 = vld [vmem:[%s8 + $0x8] sm:$0xff]
  %v220 = vld [vmem:[%s9] sm:$0xff]
  %v221 = vld [vmem:[%s9 + $0x8] sm:$0xff]
  %v222 = vld [vmem:[%s9 + $0x10] sm:$0xff]
  %v223 = vld [vmem:[%s9 + $0x18] sm:$0xff]
  %v224 = vld [vmem:[%s11] sm:$0xff]
  %v225 = vld [vmem:[%s11 + $0x8] sm:$0xff]
  %v226 = vld [vmem:[%s11 + $0x10] sm:$0xff]
  %v227 = vld [vmem:[%s11 + $0x18] sm:$0xff]
  %v228 = vld [vmem:[%s10] sm:$0x1]
  %v230 = vperm.slane %v228, 0
  %v232 = vld [vmem:[%s3] sm:$0xff]
  %v233 = vld [vmem:[%s4] sm:$0xff]
  %v234 = vld [vmem:[%s5] sm:$0xff]
  %s235 = sld [smem:[#allocation5]]
  %p236 = scmp.eq.s32.totalorder %s235, 1
  %v237 = vld [vmem:[#allocation3] sm:$0xff]
  %v239 = vsel %vm61, %v234, 0
  %241 = vmatpush.msra.mxu0 0.0
  %242 = vmatpush.msra.mxu0 0.0
  %243 = vmatpush.msra.mxu0 0.0
  %244 = vmatpush.msra.mxu0 0.0
  %245 = vmatpush.msra.mxu0 0.0
  %246 = vmatpush.msra.mxu0 0.0
  %247 = vmatpush.msra.mxu0 0.0
  %248 = vmatpush.msra.mxu0 0.0
  %249 = vmatpush.msra.mxu0 0.0
  %250 = vmatpush.msra.mxu0 0.0
  %251 = vmatpush.msra.mxu0 0.0
  %252 = vmatpush.msra.mxu0 0.0
  %253 = vmatpush.msra.mxu0 0.0
  %254 = vmatpush.msra.mxu0 0.0
  %255 = vmatpush.msra.mxu0 %v219
  %256 = vmatpush.msra.mxu0 %v218
  %257 = vmatmul.f32.gmra.mxu0 %v239
  %v258 = vpop.f32.mrf.mxu0
  %v259 = vadd.f32 0.0, %v258
  %260 = vdwg.mxu0
  %s261 = scalar_select %p236, 1, 0
  %v262 = vstv %s261
  %vm263 = vcmp.eq.s32.totalorder %v262, 1
  %v264 = vsel %vm263, %v237, %v259
  %vm265 = vcmask 261120
  %v267 = vsel %vm265, %v232, 0
  %269 = vmatpush.msra.mxu0 0.0
  %270 = vmatpush.msra.mxu0 0.0
  %271 = vmatpush.msra.mxu0 0.0
  %272 = vmatpush.msra.mxu0 0.0
  %273 = vmatpush.msra.mxu0 0.0
  %274 = vmatpush.msra.mxu0 0.0
  %275 = vmatpush.msra.mxu0 0.0
  %276 = vmatpush.msra.mxu0 0.0
  %277 = vmatpush.msra.mxu0 0.0
  %278 = vmatpush.msra.mxu0 0.0
  %279 = vmatpush.msra.mxu0 0.0
  %280 = vmatpush.msra.mxu0 0.0
  %281 = vmatpush.msra.mxu0 %v223
  %282 = vmatpush.msra.mxu0 %v222
  %283 = vmatpush.msra.mxu0 %v221
  %284 = vmatpush.msra.mxu0 %v220
  %285 = vmatmul.f32.gmra.mxu0 %v267
  %v286 = vpop.f32.mrf.mxu0
  %v287 = vadd.f32 0.0, %v286
  %288 = vdwg.mxu0
  %v289 = vadd.f32 %v264, %v287
  %v290 = vadd.f32 %v289, %v230
  %v291 = vxor.u32 %v290, 2147483648
  %v292 = vmul.f32 %v291, 1.442695
  %v293 = vpow.pop %v292
  %v294 = vadd.f32 %v293, 1.0
  %v295 = vrcp.pop %v294
  %v296 = vmul.f32 %v294, %v295
  %v297 = vsub.f32 1.0, %v296
  %v298 = vmul.f32 %v295, %v297
  %v299 = vadd.f32 %v295, %v298
  %vm300 = vweird.f32 %v294
  %vm301 = vweird.f32 %v295
  %vm302 = vmor %vm300, %vm301
  %v303 = vsel %vm302, %v295, %v299
  %v304 = vand.u32 2147483647, %v294
  %vm305 = vcmp.eq.f32.partialorder %v304, 8.507059e+37
  %v306 = vand.u32 %v294, 2147483648
  %v307 = vor.u32 1.1754944e-38, %v306
  %v308 = vsel %vm305, %v307, %v303
  %v309 = vmul.f32 1.0, %v308
  %v310 = vtanh.pop %v290
  %312 = vrot.lane.b32.xlu0 %v233, 32
  %v313 = vpop.permute.xlu0 %312
  %v315 = vmul.f32 %v309, %v313
  %317 = vrot.lane.b32.xlu0 %v310, 64
  %v318 = vpop.permute.xlu0 %317
  %v320 = vmul.f32 %v309, %v318
  %322 = vrot.lane.b32.xlu0 %v320, 32
  %v323 = vpop.permute.xlu0 %322
  %v325 = vadd.f32 %v315, %v323
  %v326 = vtanh.pop %v325
  %328 = vrot.lane.b32.xlu0 %v326, 64
  %v329 = vpop.permute.xlu0 %328
  %v331 = vmul.f32 %v309, %v329
  %v332 = vld [vmem:[#allocation2] sm:$0xff]
  %334 = vrot.lane.b32.xlu0 %v331, 32
  %v335 = vpop.permute.xlu0 %334
  %v336 = vsel %vm265, %v335, 0
  %338 = vmatpush.msra.mxu0 0.0
  %339 = vmatpush.msra.mxu0 0.0
  %340 = vmatpush.msra.mxu0 0.0
  %341 = vmatpush.msra.mxu0 0.0
  %342 = vmatpush.msra.mxu0 0.0
  %343 = vmatpush.msra.mxu0 0.0
  %344 = vmatpush.msra.mxu0 0.0
  %345 = vmatpush.msra.mxu0 0.0
  %346 = vmatpush.msra.mxu0 0.0
  %347 = vmatpush.msra.mxu0 0.0
  %348 = vmatpush.msra.mxu0 0.0
  %349 = vmatpush.msra.mxu0 0.0
  %350 = vmatpush.msra.mxu0 %v227
  %351 = vmatpush.msra.mxu0 %v226
  %352 = vmatpush.msra.mxu0 %v225
  %353 = vmatpush.msra.mxu0 %v224
  %354 = vmatmul.f32.gmra.mxu0 %v336
  %v355 = vpop.f32.mrf.mxu0
  %v356 = vadd.f32 %v332, %v355
  %357 = vdwg.mxu0
  %358 = vst.msk [vmem:[%s12] sm:$0xff] %vm61, %v356
  %s359 = sld [smem:[#allocation5 + $0x1]]
  %p360 = scmp.eq.s32.totalorder %s359, 1
  %s361 = scalar_lea.vmem [#allocation3], 8
  %v362 = vld [vmem:[%s361] sm:$0xff]
  %v364 = vsel %vm61, %v356, 0
  %366 = vmatpush.msra.mxu0 0.0
  %367 = vmatpush.msra.mxu0 0.0
  %368 = vmatpush.msra.mxu0 0.0
  %369 = vmatpush.msra.mxu0 0.0
  %370 = vmatpush.msra.mxu0 0.0
  %371 = vmatpush.msra.mxu0 0.0
  %372 = vmatpush.msra.mxu0 0.0
  %373 = vmatpush.msra.mxu0 0.0
  %374 = vmatpush.msra.mxu0 0.0
  %375 = vmatpush.msra.mxu0 0.0
  %376 = vmatpush.msra.mxu0 0.0
  %377 = vmatpush.msra.mxu0 0.0
  %378 = vmatpush.msra.mxu0 0.0
  %379 = vmatpush.msra.mxu0 0.0
  %380 = vmatpush.msra.mxu0 %v219
  %381 = vmatpush.msra.mxu0 %v218
  %382 = vmatmul.f32.gmra.mxu0 %v364
  %v383 = vpop.f32.mrf.mxu0
  %v384 = vadd.f32 0.0, %v383
  %385 = vdwg.mxu0
  %s386 = scalar_select %p360, 1, 0
  %v387 = vstv %s386
  %vm388 = vcmp.eq.s32.totalorder %v387, 1
  %v389 = vsel %vm388, %v362, %v384
  %390 = vmatpush.msra.mxu0 0.0
  %391 = vmatpush.msra.mxu0 0.0
  %392 = vmatpush.msra.mxu0 0.0
  %393 = vmatpush.msra.mxu0 0.0
  %394 = vmatpush.msra.mxu0 0.0
  %395 = vmatpush.msra.mxu0 0.0
  %396 = vmatpush.msra.mxu0 0.0
  %397 = vmatpush.msra.mxu0 0.0
  %398 = vmatpush.msra.mxu0 0.0
  %399 = vmatpush.msra.mxu0 0.0
  %400 = vmatpush.msra.mxu0 0.0
  %401 = vmatpush.msra.mxu0 0.0
  %402 = vmatpush.msra.mxu0 %v223
  %403 = vmatpush.msra.mxu0 %v222
  %404 = vmatpush.msra.mxu0 %v221
  %405 = vmatpush.msra.mxu0 %v220
  %406 = vmatmul.f32.gmra.mxu0 %v336
  %v407 = vpop.f32.mrf.mxu0
  %v408 = vadd.f32 0.0, %v407
  %409 = vdwg.mxu0
  %v410 = vadd.f32 %v389, %v408
  %v411 = vadd.f32 %v410, %v230
  %v412 = vxor.u32 %v411, 2147483648
  %v413 = vmul.f32 %v412, 1.442695
  %v414 = vpow.pop %v413
  %v415 = vadd.f32 %v414, 1.0
  %v416 = vrcp.pop %v415
  %v417 = vmul.f32 %v415, %v416
  %v418 = vsub.f32 1.0, %v417
  %v419 = vmul.f32 %v416, %v418
  %v420 = vadd.f32 %v416, %v419
  %vm421 = vweird.f32 %v415
  %vm422 = vweird.f32 %v416
  %vm423 = vmor %vm421, %vm422
  %v424 = vsel %vm423, %v416, %v420
  %v425 = vand.u32 2147483647, %v415
  %vm426 = vcmp.eq.f32.partialorder %v425, 8.507059e+37
  %v427 = vand.u32 %v415, 2147483648
  %v428 = vor.u32 1.1754944e-38, %v427
  %v429 = vsel %vm426, %v428, %v424
  %v430 = vmul.f32 1.0, %v429
  %v431 = vtanh.pop %v411
  %v432 = vmul.f32 %v430, %v325
  %434 = vrot.lane.b32.xlu0 %v431, 64
  %v435 = vpop.permute.xlu0 %434
  %v437 = vmul.f32 %v430, %v435
  %439 = vrot.lane.b32.xlu0 %v437, 32
  %v440 = vpop.permute.xlu0 %439
  %v442 = vadd.f32 %v432, %v440
  %v443 = vtanh.pop %v442
  %445 = vrot.lane.b32.xlu0 %v443, 64
  %v446 = vpop.permute.xlu0 %445
  %v448 = vmul.f32 %v430, %v446
  %s449 = scalar_lea.vmem [#allocation2], 8
  %v450 = vld [vmem:[%s449] sm:$0xff]
  %452 = vrot.lane.b32.xlu0 %v448, 32
  %v453 = vpop.permute.xlu0 %452
  %v454 = vsel %vm265, %v453, 0
  %456 = vmatpush.msra.mxu0 0.0
  %457 = vmatpush.msra.mxu0 0.0
  %458 = vmatpush.msra.mxu0 0.0
  %459 = vmatpush.msra.mxu0 0.0
  %460 = vmatpush.msra.mxu0 0.0
  %461 = vmatpush.msra.mxu0 0.0
  %462 = vmatpush.msra.mxu0 0.0
  %463 = vmatpush.msra.mxu0 0.0
  %464 = vmatpush.msra.mxu0 0.0
  %465 = vmatpush.msra.mxu0 0.0
  %466 = vmatpush.msra.mxu0 0.0
  %467 = vmatpush.msra.mxu0 0.0
  %468 = vmatpush.msra.mxu0 %v227
  %469 = vmatpush.msra.mxu0 %v226
  %470 = vmatpush.msra.mxu0 %v225
  %471 = vmatpush.msra.mxu0 %v224
  %472 = vmatmul.f32.gmra.mxu0 %v454
  %v473 = vpop.f32.mrf.mxu0
  %v474 = vadd.f32 %v450, %v473
  %475 = vdwg.mxu0
  %s476 = scalar_lea.vmem %s12, 8
  %477 = vst.msk [vmem:[%s476] sm:$0xff] %vm61, %v474
  %s478 = sld [smem:[#allocation5 + $0x2]]
  %p479 = scmp.eq.s32.totalorder %s478, 1
  %s480 = scalar_lea.vmem [#allocation3], 16
  %v481 = vld [vmem:[%s480] sm:$0xff]
  %v483 = vsel %vm61, %v474, 0
  %485 = vmatpush.msra.mxu0 0.0
  %486 = vmatpush.msra.mxu0 0.0
  %487 = vmatpush.msra.mxu0 0.0
  %488 = vmatpush.msra.mxu0 0.0
  %489 = vmatpush.msra.mxu0 0.0
  %490 = vmatpush.msra.mxu0 0.0
  %491 = vmatpush.msra.mxu0 0.0
  %492 = vmatpush.msra.mxu0 0.0
  %493 = vmatpush.msra.mxu0 0.0
  %494 = vmatpush.msra.mxu0 0.0
  %495 = vmatpush.msra.mxu0 0.0
  %496 = vmatpush.msra.mxu0 0.0
  %497 = vmatpush.msra.mxu0 0.0
  %498 = vmatpush.msra.mxu0 0.0
  %499 = vmatpush.msra.mxu0 %v219
  %500 = vmatpush.msra.mxu0 %v218
  %501 = vmatmul.f32.gmra.mxu0 %v483
  %v502 = vpop.f32.mrf.mxu0
  %v503 = vadd.f32 0.0, %v502
  %504 = vdwg.mxu0
  %s505 = scalar_select %p479, 1, 0
  %v506 = vstv %s505
  %vm507 = vcmp.eq.s32.totalorder %v506, 1
  %v508 = vsel %vm507, %v481, %v503
  %509 = vmatpush.msra.mxu0 0.0
  %510 = vmatpush.msra.mxu0 0.0
  %511 = vmatpush.msra.mxu0 0.0
  %512 = vmatpush.msra.mxu0 0.0
  %513 = vmatpush.msra.mxu0 0.0
  %514 = vmatpush.msra.mxu0 0.0
  %515 = vmatpush.msra.mxu0 0.0
  %516 = vmatpush.msra.mxu0 0.0
  %517 = vmatpush.msra.mxu0 0.0
  %518 = vmatpush.msra.mxu0 0.0
  %519 = vmatpush.msra.mxu0 0.0
  %520 = vmatpush.msra.mxu0 0.0
  %521 = vmatpush.msra.mxu0 %v223
  %522 = vmatpush.msra.mxu0 %v222
  %523 = vmatpush.msra.mxu0 %v221
  %524 = vmatpush.msra.mxu0 %v220
  %525 = vmatmul.f32.gmra.mxu0 %v454
  %v526 = vpop.f32.mrf.mxu0
  %v527 = vadd.f32 0.0, %v526
  %528 = vdwg.mxu0
  %v529 = vadd.f32 %v508, %v527
  %v530 = vadd.f32 %v529, %v230
  %v531 = vxor.u32 %v530, 2147483648
  %v532 = vmul.f32 %v531, 1.442695
  %v533 = vpow.pop %v532
  %v534 = vadd.f32 %v533, 1.0
  %v535 = vrcp.pop %v534
  %v536 = vmul.f32 %v534, %v535
  %v537 = vsub.f32 1.0, %v536
  %v538 = vmul.f32 %v535, %v537
  %v539 = vadd.f32 %v535, %v538
  %vm540 = vweird.f32 %v534
  %vm541 = vweird.f32 %v535
  %vm542 = vmor %vm540, %vm541
  %v543 = vsel %vm542, %v535, %v539
  %v544 = vand.u32 2147483647, %v534
  %vm545 = vcmp.eq.f32.partialorder %v544, 8.507059e+37
  %v546 = vand.u32 %v534, 2147483648
  %v547 = vor.u32 1.1754944e-38, %v546
  %v548 = vsel %vm545, %v547, %v543
  %v549 = vmul.f32 1.0, %v548
  %v550 = vtanh.pop %v530
  %v551 = vmul.f32 %v549, %v442
  %553 = vrot.lane.b32.xlu0 %v550, 64
  %v554 = vpop.permute.xlu0 %553
  %v556 = vmul.f32 %v549, %v554
  %558 = vrot.lane.b32.xlu0 %v556, 32
  %v559 = vpop.permute.xlu0 %558
  %v561 = vadd.f32 %v551, %v559
  %v562 = vtanh.pop %v561
  %564 = vrot.lane.b32.xlu0 %v562, 64
  %v565 = vpop.permute.xlu0 %564
  %v567 = vmul.f32 %v549, %v565
  %s568 = scalar_lea.vmem [#allocation2], 16
  %v569 = vld [vmem:[%s568] sm:$0xff]
  %571 = vrot.lane.b32.xlu0 %v567, 32
  %v572 = vpop.permute.xlu0 %571
  %v573 = vsel %vm265, %v572, 0
  %575 = vmatpush.msra.mxu0 0.0
  %576 = vmatpush.msra.mxu0 0.0
  %577 = vmatpush.msra.mxu0 0.0
  %578 = vmatpush.msra.mxu0 0.0
  %579 = vmatpush.msra.mxu0 0.0
  %580 = vmatpush.msra.mxu0 0.0
  %581 = vmatpush.msra.mxu0 0.0
  %582 = vmatpush.msra.mxu0 0.0
  %583 = vmatpush.msra.mxu0 0.0
  %584 = vmatpush.msra.mxu0 0.0
  %585 = vmatpush.msra.mxu0 0.0
  %586 = vmatpush.msra.mxu0 0.0
  %587 = vmatpush.msra.mxu0 %v227
  %588 = vmatpush.msra.mxu0 %v226
  %589 = vmatpush.msra.mxu0 %v225
  %590 = vmatpush.msra.mxu0 %v224
  %591 = vmatmul.f32.gmra.mxu0 %v573
  %v592 = vpop.f32.mrf.mxu0
  %v593 = vadd.f32 %v569, %v592
  %594 = vdwg.mxu0
  %s595 = scalar_lea.vmem %s12, 16
  %596 = vst.msk [vmem:[%s595] sm:$0xff] %vm61, %v593
  %s597 = sld [smem:[#allocation5 + $0x3]]
  %p598 = scmp.eq.s32.totalorder %s597, 1
  %s599 = scalar_lea.vmem [#allocation3], 24
  %v600 = vld [vmem:[%s599] sm:$0xff]
  %v602 = vsel %vm61, %v593, 0
  %604 = vmatpush.msra.mxu0 0.0
  %605 = vmatpush.msra.mxu0 0.0
  %606 = vmatpush.msra.mxu0 0.0
  %607 = vmatpush.msra.mxu0 0.0
  %608 = vmatpush.msra.mxu0 0.0
  %609 = vmatpush.msra.mxu0 0.0
  %610 = vmatpush.msra.mxu0 0.0
  %611 = vmatpush.msra.mxu0 0.0
  %612 = vmatpush.msra.mxu0 0.0
  %613 = vmatpush.msra.mxu0 0.0
  %614 = vmatpush.msra.mxu0 0.0
  %615 = vmatpush.msra.mxu0 0.0
  %616 = vmatpush.msra.mxu0 0.0
  %617 = vmatpush.msra.mxu0 0.0
  %618 = vmatpush.msra.mxu0 %v219
  %619 = vmatpush.msra.mxu0 %v218
  %620 = vmatmul.f32.gmra.mxu0 %v602
  %v621 = vpop.f32.mrf.mxu0
  %v622 = vadd.f32 0.0, %v621
  %623 = vdwg.mxu0
  %s624 = scalar_select %p598, 1, 0
  %v625 = vstv %s624
  %vm626 = vcmp.eq.s32.totalorder %v625, 1
  %v627 = vsel %vm626, %v600, %v622
  %628 = vmatpush.msra.mxu0 0.0
  %629 = vmatpush.msra.mxu0 0.0
  %630 = vmatpush.msra.mxu0 0.0
  %631 = vmatpush.msra.mxu0 0.0
  %632 = vmatpush.msra.mxu0 0.0
  %633 = vmatpush.msra.mxu0 0.0
  %634 = vmatpush.msra.mxu0 0.0
  %635 = vmatpush.msra.mxu0 0.0
  %636 = vmatpush.msra.mxu0 0.0
  %637 = vmatpush.msra.mxu0 0.0
  %638 = vmatpush.msra.mxu0 0.0
  %639 = vmatpush.msra.mxu0 0.0
  %640 = vmatpush.msra.mxu0 %v223
  %641 = vmatpush.msra.mxu0 %v222
  %642 = vmatpush.msra.mxu0 %v221
  %643 = vmatpush.msra.mxu0 %v220
  %644 = vmatmul.f32.gmra.mxu0 %v573
  %v645 = vpop.f32.mrf.mxu0
  %v646 = vadd.f32 0.0, %v645
  %647 = vdwg.mxu0
  %v648 = vadd.f32 %v627, %v646
  %v649 = vadd.f32 %v648, %v230
  %v650 = vxor.u32 %v649, 2147483648
  %v651 = vmul.f32 %v650, 1.442695
  %v652 = vpow.pop %v651
  %v653 = vadd.f32 %v652, 1.0
  %v654 = vrcp.pop %v653
  %v655 = vmul.f32 %v653, %v654
  %v656 = vsub.f32 1.0, %v655
  %v657 = vmul.f32 %v654, %v656
  %v658 = vadd.f32 %v654, %v657
  %vm659 = vweird.f32 %v653
  %vm660 = vweird.f32 %v654
  %vm661 = vmor %vm659, %vm660
  %v662 = vsel %vm661, %v654, %v658
  %v663 = vand.u32 2147483647, %v653
  %vm664 = vcmp.eq.f32.partialorder %v663, 8.507059e+37
  %v665 = vand.u32 %v653, 2147483648
  %v666 = vor.u32 1.1754944e-38, %v665
  %v667 = vsel %vm664, %v666, %v662
  %v668 = vmul.f32 1.0, %v667
  %v669 = vtanh.pop %v649
  %v670 = vmul.f32 %v668, %v561
  %672 = vrot.lane.b32.xlu0 %v669, 64
  %v673 = vpop.permute.xlu0 %672
  %v675 = vmul.f32 %v668, %v673
  %677 = vrot.lane.b32.xlu0 %v675, 32
  %v678 = vpop.permute.xlu0 %677
  %v680 = vadd.f32 %v670, %v678
  %v681 = vtanh.pop %v680
  %683 = vrot.lane.b32.xlu0 %v681, 64
  %v684 = vpop.permute.xlu0 %683
  %v686 = vmul.f32 %v668, %v684
  %s687 = scalar_lea.vmem [#allocation2], 24
  %v688 = vld [vmem:[%s687] sm:$0xff]
  %690 = vrot.lane.b32.xlu0 %v686, 32
  %v691 = vpop.permute.xlu0 %690
  %v692 = vsel %vm265, %v691, 0
  %694 = vmatpush.msra.mxu0 0.0
  %695 = vmatpush.msra.mxu0 0.0
  %696 = vmatpush.msra.mxu0 0.0
  %697 = vmatpush.msra.mxu0 0.0
  %698 = vmatpush.msra.mxu0 0.0
  %699 = vmatpush.msra.mxu0 0.0
  %700 = vmatpush.msra.mxu0 0.0
  %701 = vmatpush.msra.mxu0 0.0
  %702 = vmatpush.msra.mxu0 0.0
  %703 = vmatpush.msra.mxu0 0.0
  %704 = vmatpush.msra.mxu0 0.0
  %705 = vmatpush.msra.mxu0 0.0
  %706 = vmatpush.msra.mxu0 %v227
  %707 = vmatpush.msra.mxu0 %v226
  %708 = vmatpush.msra.mxu0 %v225
  %709 = vmatpush.msra.mxu0 %v224
  %710 = vmatmul.f32.gmra.mxu0 %v692
  %v711 = vpop.f32.mrf.mxu0
  %v712 = vadd.f32 %v688, %v711
  %713 = vdwg.mxu0
  %s714 = scalar_lea.vmem %s12, 24
  %715 = vst.msk [vmem:[%s714] sm:$0xff] %vm61, %v712
  %s716 = sld [smem:[#allocation5 + $0x4]]
  %p717 = scmp.eq.s32.totalorder %s716, 1
  %s718 = scalar_lea.vmem [#allocation3], 32
  %v719 = vld [vmem:[%s718] sm:$0xff]
  %v721 = vsel %vm61, %v712, 0
  %723 = vmatpush.msra.mxu0 0.0
  %724 = vmatpush.msra.mxu0 0.0
  %725 = vmatpush.msra.mxu0 0.0
  %726 = vmatpush.msra.mxu0 0.0
  %727 = vmatpush.msra.mxu0 0.0
  %728 = vmatpush.msra.mxu0 0.0
  %729 = vmatpush.msra.mxu0 0.0
  %730 = vmatpush.msra.mxu0 0.0
  %731 = vmatpush.msra.mxu0 0.0
  %732 = vmatpush.msra.mxu0 0.0
  %733 = vmatpush.msra.mxu0 0.0
  %734 = vmatpush.msra.mxu0 0.0
  %735 = vmatpush.msra.mxu0 0.0
  %736 = vmatpush.msra.mxu0 0.0
  %737 = vmatpush.msra.mxu0 %v219
  %738 = vmatpush.msra.mxu0 %v218
  %739 = vmatmul.f32.gmra.mxu0 %v721
  %v740 = vpop.f32.mrf.mxu0
  %v741 = vadd.f32 0.0, %v740
  %742 = vdwg.mxu0
  %s743 = scalar_select %p717, 1, 0
  %v744 = vstv %s743
  %vm745 = vcmp.eq.s32.totalorder %v744, 1
  %v746 = vsel %vm745, %v719, %v741
  %747 = vmatpush.msra.mxu0 0.0
  %748 = vmatpush.msra.mxu0 0.0
  %749 = vmatpush.msra.mxu0 0.0
  %750 = vmatpush.msra.mxu0 0.0
  %751 = vmatpush.msra.mxu0 0.0
  %752 = vmatpush.msra.mxu0 0.0
  %753 = vmatpush.msra.mxu0 0.0
  %754 = vmatpush.msra.mxu0 0.0
  %755 = vmatpush.msra.mxu0 0.0
  %756 = vmatpush.msra.mxu0 0.0
  %757 = vmatpush.msra.mxu0 0.0
  %758 = vmatpush.msra.mxu0 0.0
  %759 = vmatpush.msra.mxu0 %v223
  %760 = vmatpush.msra.mxu0 %v222
  %761 = vmatpush.msra.mxu0 %v221
  %762 = vmatpush.msra.mxu0 %v220
  %763 = vmatmul.f32.gmra.mxu0 %v692
  %v764 = vpop.f32.mrf.mxu0
  %v765 = vadd.f32 0.0, %v764
  %766 = vdwg.mxu0
  %v767 = vadd.f32 %v746, %v765
  %v768 = vadd.f32 %v767, %v230
  %v769 = vxor.u32 %v768, 2147483648
  %v770 = vmul.f32 %v769, 1.442695
  %v771 = vpow.pop %v770
  %v772 = vadd.f32 %v771, 1.0
  %v773 = vrcp.pop %v772
  %v774 = vmul.f32 %v772, %v773
  %v775 = vsub.f32 1.0, %v774
  %v776 = vmul.f32 %v773, %v775
  %v777 = vadd.f32 %v773, %v776
  %vm778 = vweird.f32 %v772
  %vm779 = vweird.f32 %v773
  %vm780 = vmor %vm778, %vm779
  %v781 = vsel %vm780, %v773, %v777
  %v782 = vand.u32 2147483647, %v772
  %vm783 = vcmp.eq.f32.partialorder %v782, 8.507059e+37
  %v784 = vand.u32 %v772, 2147483648
  %v785 = vor.u32 1.1754944e-38, %v784
  %v786 = vsel %vm783, %v785, %v781
  %v787 = vmul.f32 1.0, %v786
  %v788 = vtanh.pop %v768
  %v789 = vmul.f32 %v787, %v680
  %791 = vrot.lane.b32.xlu0 %v788, 64
  %v792 = vpop.permute.xlu0 %791
  %v794 = vmul.f32 %v787, %v792
  %796 = vrot.lane.b32.xlu0 %v794, 32
  %v797 = vpop.permute.xlu0 %796
  %v799 = vadd.f32 %v789, %v797
  %v800 = vtanh.pop %v799
  %802 = vrot.lane.b32.xlu0 %v800, 64
  %v803 = vpop.permute.xlu0 %802
  %v805 = vmul.f32 %v787, %v803
  %s806 = scalar_lea.vmem [#allocation2], 32
  %v807 = vld [vmem:[%s806] sm:$0xff]
  %809 = vrot.lane.b32.xlu0 %v805, 32
  %v810 = vpop.permute.xlu0 %809
  %v811 = vsel %vm265, %v810, 0
  %813 = vmatpush.msra.mxu0 0.0
  %814 = vmatpush.msra.mxu0 0.0
  %815 = vmatpush.msra.mxu0 0.0
  %816 = vmatpush.msra.mxu0 0.0
  %817 = vmatpush.msra.mxu0 0.0
  %818 = vmatpush.msra.mxu0 0.0
  %819 = vmatpush.msra.mxu0 0.0
  %820 = vmatpush.msra.mxu0 0.0
  %821 = vmatpush.msra.mxu0 0.0
  %822 = vmatpush.msra.mxu0 0.0
  %823 = vmatpush.msra.mxu0 0.0
  %824 = vmatpush.msra.mxu0 0.0
  %825 = vmatpush.msra.mxu0 %v227
  %826 = vmatpush.msra.mxu0 %v226
  %827 = vmatpush.msra.mxu0 %v225
  %828 = vmatpush.msra.mxu0 %v224
  %829 = vmatmul.f32.gmra.mxu0 %v811
  %v830 = vpop.f32.mrf.mxu0
  %v831 = vadd.f32 %v807, %v830
  %832 = vdwg.mxu0
  %s833 = scalar_lea.vmem %s12, 32
  %834 = vst.msk [vmem:[%s833] sm:$0xff] %vm61, %v831
  %s835 = sld [smem:[#allocation5 + $0x5]]
  %p836 = scmp.eq.s32.totalorder %s835, 1
  %s837 = scalar_lea.vmem [#allocation3], 40
  %v838 = vld [vmem:[%s837] sm:$0xff]
  %v840 = vsel %vm61, %v831, 0
  %842 = vmatpush.msra.mxu0 0.0
  %843 = vmatpush.msra.mxu0 0.0
  %844 = vmatpush.msra.mxu0 0.0
  %845 = vmatpush.msra.mxu0 0.0
  %846 = vmatpush.msra.mxu0 0.0
  %847 = vmatpush.msra.mxu0 0.0
  %848 = vmatpush.msra.mxu0 0.0
  %849 = vmatpush.msra.mxu0 0.0
  %850 = vmatpush.msra.mxu0 0.0
  %851 = vmatpush.msra.mxu0 0.0
  %852 = vmatpush.msra.mxu0 0.0
  %853 = vmatpush.msra.mxu0 0.0
  %854 = vmatpush.msra.mxu0 0.0
  %855 = vmatpush.msra.mxu0 0.0
  %856 = vmatpush.msra.mxu0 %v219
  %857 = vmatpush.msra.mxu0 %v218
  %858 = vmatmul.f32.gmra.mxu0 %v840
  %v859 = vpop.f32.mrf.mxu0
  %v860 = vadd.f32 0.0, %v859
  %861 = vdwg.mxu0
  %s862 = scalar_select %p836, 1, 0
  %v863 = vstv %s862
  %vm864 = vcmp.eq.s32.totalorder %v863, 1
  %v865 = vsel %vm864, %v838, %v860
  %866 = vmatpush.msra.mxu0 0.0
  %867 = vmatpush.msra.mxu0 0.0
  %868 = vmatpush.msra.mxu0 0.0
  %869 = vmatpush.msra.mxu0 0.0
  %870 = vmatpush.msra.mxu0 0.0
  %871 = vmatpush.msra.mxu0 0.0
  %872 = vmatpush.msra.mxu0 0.0
  %873 = vmatpush.msra.mxu0 0.0
  %874 = vmatpush.msra.mxu0 0.0
  %875 = vmatpush.msra.mxu0 0.0
  %876 = vmatpush.msra.mxu0 0.0
  %877 = vmatpush.msra.mxu0 0.0
  %878 = vmatpush.msra.mxu0 %v223
  %879 = vmatpush.msra.mxu0 %v222
  %880 = vmatpush.msra.mxu0 %v221
  %881 = vmatpush.msra.mxu0 %v220
  %882 = vmatmul.f32.gmra.mxu0 %v811
  %v883 = vpop.f32.mrf.mxu0
  %v884 = vadd.f32 0.0, %v883
  %885 = vdwg.mxu0
  %v886 = vadd.f32 %v865, %v884
  %v887 = vadd.f32 %v886, %v230
  %v888 = vxor.u32 %v887, 2147483648
  %v889 = vmul.f32 %v888, 1.442695
  %v890 = vpow.pop %v889
  %v891 = vadd.f32 %v890, 1.0
  %v892 = vrcp.pop %v891
  %v893 = vmul.f32 %v891, %v892
  %v894 = vsub.f32 1.0, %v893
  %v895 = vmul.f32 %v892, %v894
  %v896 = vadd.f32 %v892, %v895
  %vm897 = vweird.f32 %v891
  %vm898 = vweird.f32 %v892
  %vm899 = vmor %vm897, %vm898
  %v900 = vsel %vm899, %v892, %v896
  %v901 = vand.u32 2147483647, %v891
  %vm902 = vcmp.eq.f32.partialorder %v901, 8.507059e+37
  %v903 = vand.u32 %v891, 2147483648
  %v904 = vor.u32 1.1754944e-38, %v903
  %v905 = vsel %vm902, %v904, %v900
  %v906 = vmul.f32 1.0, %v905
  %v907 = vtanh.pop %v887
  %v908 = vmul.f32 %v906, %v799
  %910 = vrot.lane.b32.xlu0 %v907, 64
  %v911 = vpop.permute.xlu0 %910
  %v913 = vmul.f32 %v906, %v911
  %915 = vrot.lane.b32.xlu0 %v913, 32
  %v916 = vpop.permute.xlu0 %915
  %v918 = vadd.f32 %v908, %v916
  %v919 = vtanh.pop %v918
  %921 = vrot.lane.b32.xlu0 %v919, 64
  %v922 = vpop.permute.xlu0 %921
  %v924 = vmul.f32 %v906, %v922
  %s925 = scalar_lea.vmem [#allocation2], 40
  %v926 = vld [vmem:[%s925] sm:$0xff]
  %928 = vrot.lane.b32.xlu0 %v924, 32
  %v929 = vpop.permute.xlu0 %928
  %v930 = vsel %vm265, %v929, 0
  %932 = vmatpush.msra.mxu0 0.0
  %933 = vmatpush.msra.mxu0 0.0
  %934 = vmatpush.msra.mxu0 0.0
  %935 = vmatpush.msra.mxu0 0.0
  %936 = vmatpush.msra.mxu0 0.0
  %937 = vmatpush.msra.mxu0 0.0
  %938 = vmatpush.msra.mxu0 0.0
  %939 = vmatpush.msra.mxu0 0.0
  %940 = vmatpush.msra.mxu0 0.0
  %941 = vmatpush.msra.mxu0 0.0
  %942 = vmatpush.msra.mxu0 0.0
  %943 = vmatpush.msra.mxu0 0.0
  %944 = vmatpush.msra.mxu0 %v227
  %945 = vmatpush.msra.mxu0 %v226
  %946 = vmatpush.msra.mxu0 %v225
  %947 = vmatpush.msra.mxu0 %v224
  %948 = vmatmul.f32.gmra.mxu0 %v930
  %v949 = vpop.f32.mrf.mxu0
  %v950 = vadd.f32 %v926, %v949
  %951 = vdwg.mxu0
  %s952 = scalar_lea.vmem %s12, 40
  %953 = vst.msk [vmem:[%s952] sm:$0xff] %vm61, %v950
  %s954 = sld [smem:[#allocation5 + $0x6]]
  %p955 = scmp.eq.s32.totalorder %s954, 1
  %s956 = scalar_lea.vmem [#allocation3], 48
  %v957 = vld [vmem:[%s956] sm:$0xff]
  %v959 = vsel %vm61, %v950, 0
  %961 = vmatpush.msra.mxu0 0.0
  %962 = vmatpush.msra.mxu0 0.0
  %963 = vmatpush.msra.mxu0 0.0
  %964 = vmatpush.msra.mxu0 0.0
  %965 = vmatpush.msra.mxu0 0.0
  %966 = vmatpush.msra.mxu0 0.0
  %967 = vmatpush.msra.mxu0 0.0
  %968 = vmatpush.msra.mxu0 0.0
  %969 = vmatpush.msra.mxu0 0.0
  %970 = vmatpush.msra.mxu0 0.0
  %971 = vmatpush.msra.mxu0 0.0
  %972 = vmatpush.msra.mxu0 0.0
  %973 = vmatpush.msra.mxu0 0.0
  %974 = vmatpush.msra.mxu0 0.0
  %975 = vmatpush.msra.mxu0 %v219
  %976 = vmatpush.msra.mxu0 %v218
  %977 = vmatmul.f32.gmra.mxu0 %v959
  %v978 = vpop.f32.mrf.mxu0
  %v979 = vadd.f32 0.0, %v978
  %980 = vdwg.mxu0
  %s981 = scalar_select %p955, 1, 0
  %v982 = vstv %s981
  %vm983 = vcmp.eq.s32.totalorder %v982, 1
  %v984 = vsel %vm983, %v957, %v979
  %985 = vmatpush.msra.mxu0 0.0
  %986 = vmatpush.msra.mxu0 0.0
  %987 = vmatpush.msra.mxu0 0.0
  %988 = vmatpush.msra.mxu0 0.0
  %989 = vmatpush.msra.mxu0 0.0
  %990 = vmatpush.msra.mxu0 0.0
  %991 = vmatpush.msra.mxu0 0.0
  %992 = vmatpush.msra.mxu0 0.0
  %993 = vmatpush.msra.mxu0 0.0
  %994 = vmatpush.msra.mxu0 0.0
  %995 = vmatpush.msra.mxu0 0.0
  %996 = vmatpush.msra.mxu0 0.0
  %997 = vmatpush.msra.mxu0 %v223
  %998 = vmatpush.msra.mxu0 %v222
  %999 = vmatpush.msra.mxu0 %v221
  %1000 = vmatpush.msra.mxu0 %v220
  %1001 = vmatmul.f32.gmra.mxu0 %v930
  %v1002 = vpop.f32.mrf.mxu0
  %v1003 = vadd.f32 0.0, %v1002
  %1004 = vdwg.mxu0
  %v1005 = vadd.f32 %v984, %v1003
  %v1006 = vadd.f32 %v1005, %v230
  %v1007 = vxor.u32 %v1006, 2147483648
  %v1008 = vmul.f32 %v1007, 1.442695
  %v1009 = vpow.pop %v1008
  %v1010 = vadd.f32 %v1009, 1.0
  %v1011 = vrcp.pop %v1010
  %v1012 = vmul.f32 %v1010, %v1011
  %v1013 = vsub.f32 1.0, %v1012
  %v1014 = vmul.f32 %v1011, %v1013
  %v1015 = vadd.f32 %v1011, %v1014
  %vm1016 = vweird.f32 %v1010
  %vm1017 = vweird.f32 %v1011
  %vm1018 = vmor %vm1016, %vm1017
  %v1019 = vsel %vm1018, %v1011, %v1015
  %v1020 = vand.u32 2147483647, %v1010
  %vm1021 = vcmp.eq.f32.partialorder %v1020, 8.507059e+37
  %v1022 = vand.u32 %v1010, 2147483648
  %v1023 = vor.u32 1.1754944e-38, %v1022
  %v1024 = vsel %vm1021, %v1023, %v1019
  %v1025 = vmul.f32 1.0, %v1024
  %v1026 = vtanh.pop %v1006
  %v1027 = vmul.f32 %v1025, %v918
  %1029 = vrot.lane.b32.xlu0 %v1026, 64
  %v1030 = vpop.permute.xlu0 %1029
  %v1032 = vmul.f32 %v1025, %v1030
  %1034 = vrot.lane.b32.xlu0 %v1032, 32
  %v1035 = vpop.permute.xlu0 %1034
  %v1037 = vadd.f32 %v1027, %v1035
  %v1038 = vtanh.pop %v1037
  %1040 = vrot.lane.b32.xlu0 %v1038, 64
  %v1041 = vpop.permute.xlu0 %1040
  %v1043 = vmul.f32 %v1025, %v1041
  %s1044 = scalar_lea.vmem [#allocation2], 48
  %v1045 = vld [vmem:[%s1044] sm:$0xff]
  %1047 = vrot.lane.b32.xlu0 %v1043, 32
  %v1048 = vpop.permute.xlu0 %1047
  %v1049 = vsel %vm265, %v1048, 0
  %1051 = vmatpush.msra.mxu0 0.0
  %1052 = vmatpush.msra.mxu0 0.0
  %1053 = vmatpush.msra.mxu0 0.0
  %1054 = vmatpush.msra.mxu0 0.0
  %1055 = vmatpush.msra.mxu0 0.0
  %1056 = vmatpush.msra.mxu0 0.0
  %1057 = vmatpush.msra.mxu0 0.0
  %1058 = vmatpush.msra.mxu0 0.0
  %1059 = vmatpush.msra.mxu0 0.0
  %1060 = vmatpush.msra.mxu0 0.0
  %1061 = vmatpush.msra.mxu0 0.0
  %1062 = vmatpush.msra.mxu0 0.0
  %1063 = vmatpush.msra.mxu0 %v227
  %1064 = vmatpush.msra.mxu0 %v226
  %1065 = vmatpush.msra.mxu0 %v225
  %1066 = vmatpush.msra.mxu0 %v224
  %1067 = vmatmul.f32.gmra.mxu0 %v1049
  %v1068 = vpop.f32.mrf.mxu0
  %v1069 = vadd.f32 %v1045, %v1068
  %1070 = vdwg.mxu0
  %s1071 = scalar_lea.vmem %s12, 48
  %1072 = vst.msk [vmem:[%s1071] sm:$0xff] %vm61, %v1069
  %s1073 = sld [smem:[#allocation5 + $0x7]]
  %p1074 = scmp.eq.s32.totalorder %s1073, 1
  %s1075 = scalar_lea.vmem [#allocation3], 56
  %v1076 = vld [vmem:[%s1075] sm:$0xff]
  %v1078 = vsel %vm61, %v1069, 0
  %1080 = vmatpush.msra.mxu0 0.0
  %1081 = vmatpush.msra.mxu0 0.0
  %1082 = vmatpush.msra.mxu0 0.0
  %1083 = vmatpush.msra.mxu0 0.0
  %1084 = vmatpush.msra.mxu0 0.0
  %1085 = vmatpush.msra.mxu0 0.0
  %1086 = vmatpush.msra.mxu0 0.0
  %1087 = vmatpush.msra.mxu0 0.0
  %1088 = vmatpush.msra.mxu0 0.0
  %1089 = vmatpush.msra.mxu0 0.0
  %1090 = vmatpush.msra.mxu0 0.0
  %1091 = vmatpush.msra.mxu0 0.0
  %1092 = vmatpush.msra.mxu0 0.0
  %1093 = vmatpush.msra.mxu0 0.0
  %1094 = vmatpush.msra.mxu0 %v219
  %1095 = vmatpush.msra.mxu0 %v218
  %1096 = vmatmul.f32.gmra.mxu0 %v1078
  %v1097 = vpop.f32.mrf.mxu0
  %v1098 = vadd.f32 0.0, %v1097
  %1099 = vdwg.mxu0
  %s1100 = scalar_select %p1074, 1, 0
  %v1101 = vstv %s1100
  %vm1102 = vcmp.eq.s32.totalorder %v1101, 1
  %v1103 = vsel %vm1102, %v1076, %v1098
  %1104 = vmatpush.msra.mxu0 0.0
  %1105 = vmatpush.msra.mxu0 0.0
  %1106 = vmatpush.msra.mxu0 0.0
  %1107 = vmatpush.msra.mxu0 0.0
  %1108 = vmatpush.msra.mxu0 0.0
  %1109 = vmatpush.msra.mxu0 0.0
  %1110 = vmatpush.msra.mxu0 0.0
  %1111 = vmatpush.msra.mxu0 0.0
  %1112 = vmatpush.msra.mxu0 0.0
  %1113 = vmatpush.msra.mxu0 0.0
  %1114 = vmatpush.msra.mxu0 0.0
  %1115 = vmatpush.msra.mxu0 0.0
  %1116 = vmatpush.msra.mxu0 %v223
  %1117 = vmatpush.msra.mxu0 %v222
  %1118 = vmatpush.msra.mxu0 %v221
  %1119 = vmatpush.msra.mxu0 %v220
  %1120 = vmatmul.f32.gmra.mxu0 %v1049
  %v1121 = vpop.f32.mrf.mxu0
  %v1122 = vadd.f32 0.0, %v1121
  %1123 = vdwg.mxu0
  %v1124 = vadd.f32 %v1103, %v1122
  %v1125 = vadd.f32 %v1124, %v230
  %v1126 = vxor.u32 %v1125, 2147483648
  %v1127 = vmul.f32 %v1126, 1.442695
  %v1128 = vpow.pop %v1127
  %v1129 = vadd.f32 %v1128, 1.0
  %v1130 = vrcp.pop %v1129
  %v1131 = vmul.f32 %v1129, %v1130
  %v1132 = vsub.f32 1.0, %v1131
  %v1133 = vmul.f32 %v1130, %v1132
  %v1134 = vadd.f32 %v1130, %v1133
  %vm1135 = vweird.f32 %v1129
  %vm1136 = vweird.f32 %v1130
  %vm1137 = vmor %vm1135, %vm1136
  %v1138 = vsel %vm1137, %v1130, %v1134
  %v1139 = vand.u32 2147483647, %v1129
  %vm1140 = vcmp.eq.f32.partialorder %v1139, 8.507059e+37
  %v1141 = vand.u32 %v1129, 2147483648
  %v1142 = vor.u32 1.1754944e-38, %v1141
  %v1143 = vsel %vm1140, %v1142, %v1138
  %v1144 = vmul.f32 1.0, %v1143
  %v1145 = vtanh.pop %v1125
  %v1146 = vmul.f32 %v1144, %v1037
  %1148 = vrot.lane.b32.xlu0 %v1145, 64
  %v1149 = vpop.permute.xlu0 %1148
  %v1151 = vmul.f32 %v1144, %v1149
  %1153 = vrot.lane.b32.xlu0 %v1151, 32
  %v1154 = vpop.permute.xlu0 %1153
  %v1156 = vadd.f32 %v1146, %v1154
  %v1157 = vtanh.pop %v1156
  %1159 = vrot.lane.b32.xlu0 %v1157, 64
  %v1160 = vpop.permute.xlu0 %1159
  %v1162 = vmul.f32 %v1144, %v1160
  %s1163 = scalar_lea.vmem [#allocation2], 56
  %v1164 = vld [vmem:[%s1163] sm:$0xff]
  %1166 = vrot.lane.b32.xlu0 %v1162, 32
  %v1167 = vpop.permute.xlu0 %1166
  %v1168 = vsel %vm265, %v1167, 0
  %1170 = vmatpush.msra.mxu0 0.0
  %1171 = vmatpush.msra.mxu0 0.0
  %1172 = vmatpush.msra.mxu0 0.0
  %1173 = vmatpush.msra.mxu0 0.0
  %1174 = vmatpush.msra.mxu0 0.0
  %1175 = vmatpush.msra.mxu0 0.0
  %1176 = vmatpush.msra.mxu0 0.0
  %1177 = vmatpush.msra.mxu0 0.0
  %1178 = vmatpush.msra.mxu0 0.0
  %1179 = vmatpush.msra.mxu0 0.0
  %1180 = vmatpush.msra.mxu0 0.0
  %1181 = vmatpush.msra.mxu0 0.0
  %1182 = vmatpush.msra.mxu0 %v227
  %1183 = vmatpush.msra.mxu0 %v226
  %1184 = vmatpush.msra.mxu0 %v225
  %1185 = vmatpush.msra.mxu0 %v224
  %1186 = vmatmul.f32.gmra.mxu0 %v1168
  %v1187 = vpop.f32.mrf.mxu0
  %v1188 = vadd.f32 %v1164, %v1187
  %1189 = vdwg.mxu0
  %s1190 = scalar_lea.vmem %s12, 56
  %1191 = vst.msk [vmem:[%s1190] sm:$0xff] %vm61, %v1188
  // Predicated region
  $region46: #{model_forward.1} parent=0 // pred_check
    _
  $region47: #{model_forward.1} parent=0 // pred_check_branch
    %1193 = sbr.rel (0) target = $region49
  $region48: #{model_forward.1} parent=0 // pred_region
    _
  $region49: #{model_forward.1} parent=0 // pred_fallthru
    _
  // Predicated region
  $region50: #{model_forward.1} parent=0 // pred_check
    _
  $region51: #{model_forward.1} parent=0 // pred_check_branch
    %1195 = sbr.rel (0) target = $region53
  $region52: #{model_forward.1} parent=0 // pred_region
    _
  $region53: #{model_forward.1} parent=0 // pred_fallthru
    _

</llo_original>
